<compile_context>
chip_gen: v6e
topology: v6e:2x2x1
jax: 0.10.0
libtpu: 0.0.40
codegen_flags: <defaults>
</compile_context>

<pallas_src>
import functools
import math

import jax
import jax.numpy as jnp
from jax import lax
from jax.experimental import pallas as pl
from jax.experimental.pallas import tpu as pltpu

# Finite stand-in for -inf: exp(x - max) underflows to exactly 0 for masked entries but
# avoids -inf/NaN propagation for pathological fully-masked rows (documented divergence
# from torch, which yields NaN rows there).
_BIG_NEG = -1e30


def _softmax_lastdim(s):
    """Row softmax in f32; EUP approx reciprocal + one Newton step (~f32-exact)."""
    m = jnp.max(s, axis=-1, keepdims=True)
    e = jnp.exp(s - m)
    l = jnp.sum(e, axis=-1, keepdims=True)
    r = pl.reciprocal(l, approx=True)      # EUP slot: nearly free next to MXU/VPU work
    r = r * (2.0 - l * r)                  # Newton refinement
    return e * r


def _mha_kernel(*refs, n_heads, mask_mode, q_tile):
    """Fused MHA + output projection for one (batch, query-tile) grid point.

    refs = ([mask_ref,] q_ref, k_ref, v_ref, wq_ref, wk_ref, wv_ref, wo_ref, o_ref)
    """
    if mask_mode == "dense":
        mask_ref, q_ref, k_ref, v_ref, wq_ref, wk_ref, wv_ref, wo_ref, o_ref = refs
    else:
        q_ref, k_ref, v_ref, wq_ref, wk_ref, wv_ref, wo_ref, o_ref = refs
        mask_ref = None

    q = q_ref[0]                   # (tq, E) bf16
    k = k_ref[0]                   # (T,  E) bf16
    v = v_ref[0]                   # (T,  E) bf16
    tq = q.shape[0]
    T = k.shape[0]

    if mask_mode == "dense":
        masked = mask_ref[0] != 0                          # int8 compare, no f32 convert
    elif mask_mode == "causal":
        q0 = pl.program_id(1) * q_tile                     # global query offset of this tile
        row = q0 + lax.broadcasted_iota(jnp.int32, (tq, T), 0)
        col = lax.broadcasted_iota(jnp.int32, (tq, T), 1)
        masked = col > row                                 # no mask DMA at all
    else:
        masked = None

    head_outs = []
    for h in range(n_heads):       # static unroll; H is small at these sizes
        # Per-head projections: deep E contraction, outputs start at lane 0.
        qh = jnp.dot(q, wq_ref[h], preferred_element_type=jnp.float32)    # (tq, D)
        kh = jnp.dot(k, wk_ref[h], preferred_element_type=jnp.float32)    # (T,  D)
        vh = jnp.dot(v, wv_ref[h], preferred_element_type=jnp.float32)    # (T,  D)

        # q_h @ k_h^T without an explicit transpose: contract on the D axis (bf16 MXU).
        s = lax.dot_general(qh.astype(jnp.bfloat16), kh.astype(jnp.bfloat16),
                            (((1,), (1,)), ((), ())),
                            preferred_element_type=jnp.float32)           # (tq, T) f32

        if masked is not None:
            s = jnp.where(masked, _BIG_NEG, s)

        p = _softmax_lastdim(s)                                           # f32
        # TODO(synk): attention_dropout is identity in eval mode; no RNG dropout here.
        oh = jnp.dot(p.astype(jnp.bfloat16), vh.astype(jnp.bfloat16),
                     preferred_element_type=jnp.float32)                  # (tq, D)
        head_outs.append(oh.astype(jnp.bfloat16))

    # Hoisted output projection: one deep (tq, A) @ (A, E) matmul instead of H shallow
    # D-deep matmuls + H accumulator adds.
    heads = jnp.concatenate(head_outs, axis=-1)                           # (tq, A) bf16
    out = jnp.dot(heads, wo_ref[...], preferred_element_type=jnp.float32)  # (tq, E) f32
    o_ref[0] = out.astype(o_ref.dtype)
    # TODO(synk): mh_dropout is identity in eval mode; not implemented.


def multi_head_attention(q, k, v, wq, wk, wv, wo, mask=None, causal=False):
    """Fused MHA forward. grid = (B, T // tq), both axes megacore-parallel.

    q, k, v : (B, T, E)
    wq/wk/wv: (H, D, E) per-head nn.Linear weights (bias=False)
    wo      : (E, A)    output nn.Linear weight, A = H * D
    mask    : optional (B, T, T), nonzero == masked out (torch masked_fill_ semantics)
    causal  : if True, ignore `mask` and build the causal mask in-kernel (no mask DMA)
    """
    B, T, E = q.shape
    H, D, _ = wq.shape
    A = H * D
    scale = 1.0 / math.sqrt(D)

    # One-time host-side weight re-pack (bf16 MXU operands; scale folded into wq).
    wq_h = (jnp.transpose(wq, (0, 2, 1)) * scale).astype(jnp.bfloat16)   # (H, E, D)
    wk_h = jnp.transpose(wk, (0, 2, 1)).astype(jnp.bfloat16)             # (H, E, D)
    wv_h = jnp.transpose(wv, (0, 2, 1)).astype(jnp.bfloat16)             # (H, E, D)
    wo_t = wo.T.astype(jnp.bfloat16)                                     # (A, E)
    # NOTE: a single fused (E, 3A) QKV weight is not applicable here: the module takes
    # distinct q / k / v input tensors, so the three projections contract different inputs.

    q_b = q.astype(jnp.bfloat16)
    k_b = k.astype(jnp.bfloat16)
    v_b = v.astype(jnp.bfloat16)

    # Query-tile size: 256 (v6e MXU-shaped) > 128 (v5e/v7x) > full T for tiny sequences.
    if T % 256 == 0:
        tq = 256
    elif T % 128 == 0:
        tq = 128
    else:
        tq = T
    n_qt = T // tq

    if causal:
        mask_mode = "causal"
    elif mask is not None:
        mask_mode = "dense"
    else:
        mask_mode = "none"

    kernel = functools.partial(_mha_kernel, n_heads=H, mask_mode=mask_mode, q_tile=tq)

    q_spec = pl.BlockSpec((1, tq, E), lambda b, t: (b, t, 0))
    kv_spec = pl.BlockSpec((1, T, E), lambda b, t: (b, 0, 0))
    w_spec = pl.BlockSpec((H, E, D), lambda b, t: (0, 0, 0))     # constant block -> fetched once
    wo_spec = pl.BlockSpec((A, E), lambda b, t: (0, 0))

    in_specs = [q_spec, kv_spec, kv_spec, w_spec, w_spec, w_spec, wo_spec]
    operands = [q_b, k_b, v_b, wq_h, wk_h, wv_h, wo_t]
    if mask_mode == "dense":
        # int8 mask: 4x less HBM traffic than int32 (nonzero == masked out).
        in_specs.insert(0, pl.BlockSpec((1, tq, T), lambda b, t: (b, t, 0)))
        operands.insert(0, (mask != 0).astype(jnp.int8))

    return pl.pallas_call(
        kernel,
        out_shape=jax.ShapeDtypeStruct((B, T, E), q.dtype),
        grid=(B, n_qt),
        in_specs=in_specs,
        out_specs=pl.BlockSpec((1, tq, E), lambda b, t: (b, t, 0)),
        compiler_params=pltpu.CompilerParams(
            dimension_semantics=("parallel", "parallel"),
            vmem_limit_bytes=32 * 1024 * 1024),
    )(*operands)


def _reference(q, k, v, mask, wq, wk, wv, wo):
    # Pure-JAX re-implementation of the PyTorch forward (eval mode) for verification.
    H, D, _ = wq.shape
    outs = []
    for h in range(H):
        qh = q @ wq[h].T
        kh = k @ wk[h].T
        vh = v @ wv[h].T
        prod = jnp.einsum("btd,bsd->bts", qh, kh)
        if mask is not None:
            prod = jnp.where(mask != 0, -jnp.inf, prod)
        prod = prod / math.sqrt(D)
        p = jax.nn.softmax(prod, axis=-1)
        outs.append(jnp.einsum("bts,bsd->btd", p, vh))
    cat = jnp.concatenate(outs, axis=-1)
    return cat @ wo.T


if __name__ == "__main__":
    B, T, E = 2, 8, 32          # batch, seq, embedding_dim
    A, H = 32, 4                # attention_size, n_heads
    D = A // H                  # per-head attention size

    key = jax.random.PRNGKey(0)
    k_q, k_k, k_v, k_wq, k_wk, k_wv, k_wo = jax.random.split(key, 7)

    q = jax.random.normal(k_q, (B, T, E), dtype=jnp.float32)
    k = jax.random.normal(k_k, (B, T, E), dtype=jnp.float32)
    v = jax.random.normal(k_v, (B, T, E), dtype=jnp.float32)

    # Deterministic parameter init (nn.Linear-style scale).
    s_in = 1.0 / math.sqrt(E)
    s_a = 1.0 / math.sqrt(A)
    wq = jax.random.uniform(k_wq, (H, D, E), jnp.float32, -s_in, s_in)
    wk = jax.random.uniform(k_wk, (H, D, E), jnp.float32, -s_in, s_in)
    wv = jax.random.uniform(k_wv, (H, D, E), jnp.float32, -s_in, s_in)
    wo = jax.random.uniform(k_wo, (E, A), jnp.float32, -s_a, s_a)

    # Causal mask: mask[i, j] = 1 where j > i (masked out), broadcast over batch.
    causal = (jnp.arange(T)[None, :] > jnp.arange(T)[:, None]).astype(jnp.int32)
    mask = jnp.broadcast_to(causal, (B, T, T))

    # Exercise both the explicit-mask path (module semantics) and the in-kernel causal
    # path (no mask DMA).
    out_dense = multi_head_attention(q, k, v, wq, wk, wv, wo, mask=mask)
    out_causal = multi_head_attention(q, k, v, wq, wk, wv, wo, causal=True)
    out_dense, out_causal = jax.block_until_ready((out_dense, out_causal))

    ref = _reference(q, k, v, mask, wq, wk, wv, wo)
    assert out_dense.shape == (B, T, E)
    # Tolerance covers bf16 MXU operands (f32 accumulation), the approx-reciprocal(+Newton)
    # softmax normalization, and the 1/sqrt(D) scale folded into wq.
    assert jnp.allclose(out_dense, ref, atol=2e-2, rtol=2e-2), "dense-mask path mismatch"
    assert jnp.allclose(out_causal, ref, atol=2e-2, rtol=2e-2), "causal path mismatch"

    print("KERNEL_OK")
</pallas_src>

<mosaic_0001>
module attributes {stable_mosaic.version = 11 : i64} {
  func.func @_mha_kernel(%arg0: i32, %arg1: i32, %arg2: memref<1x8x8xi8, #tpu.memory_space<vmem>>, %arg3: memref<1x8x32xbf16, #tpu.memory_space<vmem>>, %arg4: memref<1x8x32xbf16, #tpu.memory_space<vmem>>, %arg5: memref<1x8x32xbf16, #tpu.memory_space<vmem>>, %arg6: memref<4x32x8xbf16, #tpu.memory_space<vmem>>, %arg7: memref<4x32x8xbf16, #tpu.memory_space<vmem>>, %arg8: memref<4x32x8xbf16, #tpu.memory_space<vmem>>, %arg9: memref<32x32xbf16, #tpu.memory_space<vmem>>, %arg10: memref<1x8x32xf32, #tpu.memory_space<vmem>>) attributes {dimension_semantics = [#tpu.dimension_semantics<parallel>, #tpu.dimension_semantics<parallel>], iteration_bounds = array<i64: 2, 1>, scalar_prefetch = 0 : i64, scratch_operands = 0 : i64, tpu.core_type = #tpu.core_type<tc>, window_params = [{transform_indices = @transform_0, window_bounds = array<i64: 1, 8, 8>}, {transform_indices = @transform_1, window_bounds = array<i64: 1, 8, 32>}, {transform_indices = @transform_2, window_bounds = array<i64: 1, 8, 32>}, {transform_indices = @transform_3, window_bounds = array<i64: 1, 8, 32>}, {pipeline_mode = #tpu.pipeline_mode<synchronous>, transform_indices = @transform_4, window_bounds = array<i64: 4, 32, 8>}, {pipeline_mode = #tpu.pipeline_mode<synchronous>, transform_indices = @transform_5, window_bounds = array<i64: 4, 32, 8>}, {pipeline_mode = #tpu.pipeline_mode<synchronous>, transform_indices = @transform_6, window_bounds = array<i64: 4, 32, 8>}, {pipeline_mode = #tpu.pipeline_mode<synchronous>, transform_indices = @transform_7, window_bounds = array<i64: 32, 32>}, {transform_indices = @transform_8, window_bounds = array<i64: 1, 8, 32>}]} {
    %c0 = arith.constant 0 : index
    %c0_0 = arith.constant 0 : index
    %c0_1 = arith.constant 0 : index
    %0 = vector.load %arg3[%c0, %c0_0, %c0_1] : memref<1x8x32xbf16, #tpu.memory_space<vmem>>, vector<1x8x32xbf16>
    %1 = vector.shape_cast %0 : vector<1x8x32xbf16> to vector<8x32xbf16>
    %c0_2 = arith.constant 0 : index
    %c0_3 = arith.constant 0 : index
    %c0_4 = arith.constant 0 : index
    %2 = vector.load %arg4[%c0_2, %c0_3, %c0_4] : memref<1x8x32xbf16, #tpu.memory_space<vmem>>, vector<1x8x32xbf16>
    %3 = vector.shape_cast %2 : vector<1x8x32xbf16> to vector<8x32xbf16>
    %c0_5 = arith.constant 0 : index
    %c0_6 = arith.constant 0 : index
    %c0_7 = arith.constant 0 : index
    %4 = vector.load %arg5[%c0_5, %c0_6, %c0_7] : memref<1x8x32xbf16, #tpu.memory_space<vmem>>, vector<1x8x32xbf16>
    %5 = vector.shape_cast %4 : vector<1x8x32xbf16> to vector<8x32xbf16>
    %c0_8 = arith.constant 0 : index
    %c0_9 = arith.constant 0 : index
    %c0_10 = arith.constant 0 : index
    %6 = vector.load %arg2[%c0_8, %c0_9, %c0_10] : memref<1x8x8xi8, #tpu.memory_space<vmem>>, vector<1x8x8xi8>
    %7 = vector.shape_cast %6 : vector<1x8x8xi8> to vector<8x8xi8>
    %c0_i8 = arith.constant 0 : i8
    %8 = vector.broadcast %c0_i8 : i8 to vector<8x8xi8>
    %9 = arith.cmpi ne, %7, %8 : vector<8x8xi8>
    %c0_11 = arith.constant 0 : index
    %c0_12 = arith.constant 0 : index
    %c0_13 = arith.constant 0 : index
    %10 = vector.load %arg6[%c0_11, %c0_12, %c0_13] : memref<4x32x8xbf16, #tpu.memory_space<vmem>>, vector<1x32x8xbf16>
    %11 = vector.shape_cast %10 : vector<1x32x8xbf16> to vector<32x8xbf16>
    %cst = arith.constant dense<0.000000e+00> : vector<8x8xf32>
    %12 = tpu.matmul %1, %11, %cst {dimension_numbers = #tpu.dot_dimension_numbers<[1], [0], [0], [1], [0, 0, 1, 1], [], []>} : vector<8x32xbf16>, vector<32x8xbf16>, vector<8x8xf32> -> vector<8x8xf32>
    %c0_14 = arith.constant 0 : index
    %c0_15 = arith.constant 0 : index
    %c0_16 = arith.constant 0 : index
    %13 = vector.load %arg7[%c0_14, %c0_15, %c0_16] : memref<4x32x8xbf16, #tpu.memory_space<vmem>>, vector<1x32x8xbf16>
    %14 = vector.shape_cast %13 : vector<1x32x8xbf16> to vector<32x8xbf16>
    %cst_17 = arith.constant dense<0.000000e+00> : vector<8x8xf32>
    %15 = tpu.matmul %3, %14, %cst_17 {dimension_numbers = #tpu.dot_dimension_numbers<[1], [0], [0], [1], [0, 0, 1, 1], [], []>} : vector<8x32xbf16>, vector<32x8xbf16>, vector<8x8xf32> -> vector<8x8xf32>
    %c0_18 = arith.constant 0 : index
    %c0_19 = arith.constant 0 : index
    %c0_20 = arith.constant 0 : index
    %16 = vector.load %arg8[%c0_18, %c0_19, %c0_20] : memref<4x32x8xbf16, #tpu.memory_space<vmem>>, vector<1x32x8xbf16>
    %17 = vector.shape_cast %16 : vector<1x32x8xbf16> to vector<32x8xbf16>
    %cst_21 = arith.constant dense<0.000000e+00> : vector<8x8xf32>
    %18 = tpu.matmul %5, %17, %cst_21 {dimension_numbers = #tpu.dot_dimension_numbers<[1], [0], [0], [1], [0, 0, 1, 1], [], []>} : vector<8x32xbf16>, vector<32x8xbf16>, vector<8x8xf32> -> vector<8x8xf32>
    %19 = arith.truncf %12 : vector<8x8xf32> to vector<8x8xbf16>
    %20 = arith.truncf %15 : vector<8x8xf32> to vector<8x8xbf16>
    %cst_22 = arith.constant dense<0.000000e+00> : vector<8x8xf32>
    %21 = tpu.matmul %19, %20, %cst_22 {dimension_numbers = #tpu.dot_dimension_numbers<[1], [1], [0], [0], [0, 0, 1, 0], [], []>} : vector<8x8xbf16>, vector<8x8xbf16>, vector<8x8xf32> -> vector<8x8xf32>
    %cst_23 = arith.constant -1.000000e+30 : f32
    %22 = vector.broadcast %cst_23 : f32 to vector<8x8xf32>
    %23 = arith.select %9, %22, %21 : vector<8x8xi1>, vector<8x8xf32>
    %cst_24 = arith.constant dense<0xFF800000> : vector<8xf32>
    %24 = vector.multi_reduction <maximumf>, %23, %cst_24 [1] : vector<8x8xf32> to vector<8xf32>
    %25 = vector.shape_cast %24 : vector<8xf32> to vector<8x1xf32>
    %26 = vector.broadcast %25 : vector<8x1xf32> to vector<8x8xf32>
    %27 = arith.subf %23, %26 : vector<8x8xf32>
    %28 = math.exp %27 : vector<8x8xf32>
    %cst_25 = arith.constant dense<0.000000e+00> : vector<8xf32>
    %29 = vector.multi_reduction <add>, %28, %cst_25 [1] : vector<8x8xf32> to vector<8xf32>
    %30 = vector.shape_cast %29 : vector<8xf32> to vector<8x1xf32>
    %31 = tpu.reciprocal %30 {approx = true} : vector<8x1xf32> -> vector<8x1xf32>
    %32 = arith.mulf %30, %31 : vector<8x1xf32>
    %cst_26 = arith.constant 2.000000e+00 : f32
    %33 = vector.broadcast %cst_26 : f32 to vector<8x1xf32>
    %34 = arith.subf %33, %32 : vector<8x1xf32>
    %35 = arith.mulf %31, %34 : vector<8x1xf32>
    %36 = vector.broadcast %35 : vector<8x1xf32> to vector<8x8xf32>
    %37 = arith.mulf %28, %36 : vector<8x8xf32>
    %38 = arith.truncf %37 : vector<8x8xf32> to vector<8x8xbf16>
    %39 = arith.truncf %18 : vector<8x8xf32> to vector<8x8xbf16>
    %cst_27 = arith.constant dense<0.000000e+00> : vector<8x8xf32>
    %40 = tpu.matmul %38, %39, %cst_27 {dimension_numbers = #tpu.dot_dimension_numbers<[1], [0], [0], [1], [0, 0, 1, 1], [], []>} : vector<8x8xbf16>, vector<8x8xbf16>, vector<8x8xf32> -> vector<8x8xf32>
    %41 = arith.truncf %40 : vector<8x8xf32> to vector<8x8xbf16>
    %c1 = arith.constant 1 : index
    %c0_28 = arith.constant 0 : index
    %c0_29 = arith.constant 0 : index
    %42 = vector.load %arg6[%c1, %c0_28, %c0_29] : memref<4x32x8xbf16, #tpu.memory_space<vmem>>, vector<1x32x8xbf16>
    %43 = vector.shape_cast %42 : vector<1x32x8xbf16> to vector<32x8xbf16>
    %cst_30 = arith.constant dense<0.000000e+00> : vector<8x8xf32>
    %44 = tpu.matmul %1, %43, %cst_30 {dimension_numbers = #tpu.dot_dimension_numbers<[1], [0], [0], [1], [0, 0, 1, 1], [], []>} : vector<8x32xbf16>, vector<32x8xbf16>, vector<8x8xf32> -> vector<8x8xf32>
    %c1_31 = arith.constant 1 : index
    %c0_32 = arith.constant 0 : index
    %c0_33 = arith.constant 0 : index
    %45 = vector.load %arg7[%c1_31, %c0_32, %c0_33] : memref<4x32x8xbf16, #tpu.memory_space<vmem>>, vector<1x32x8xbf16>
    %46 = vector.shape_cast %45 : vector<1x32x8xbf16> to vector<32x8xbf16>
    %cst_34 = arith.constant dense<0.000000e+00> : vector<8x8xf32>
    %47 = tpu.matmul %3, %46, %cst_34 {dimension_numbers = #tpu.dot_dimension_numbers<[1], [0], [0], [1], [0, 0, 1, 1], [], []>} : vector<8x32xbf16>, vector<32x8xbf16>, vector<8x8xf32> -> vector<8x8xf32>
    %c1_35 = arith.constant 1 : index
    %c0_36 = arith.constant 0 : index
    %c0_37 = arith.constant 0 : index
    %48 = vector.load %arg8[%c1_35, %c0_36, %c0_37] : memref<4x32x8xbf16, #tpu.memory_space<vmem>>, vector<1x32x8xbf16>
    %49 = vector.shape_cast %48 : vector<1x32x8xbf16> to vector<32x8xbf16>
    %cst_38 = arith.constant dense<0.000000e+00> : vector<8x8xf32>
    %50 = tpu.matmul %5, %49, %cst_38 {dimension_numbers = #tpu.dot_dimension_numbers<[1], [0], [0], [1], [0, 0, 1, 1], [], []>} : vector<8x32xbf16>, vector<32x8xbf16>, vector<8x8xf32> -> vector<8x8xf32>
    %51 = arith.truncf %44 : vector<8x8xf32> to vector<8x8xbf16>
    %52 = arith.truncf %47 : vector<8x8xf32> to vector<8x8xbf16>
    %cst_39 = arith.constant dense<0.000000e+00> : vector<8x8xf32>
    %53 = tpu.matmul %51, %52, %cst_39 {dimension_numbers = #tpu.dot_dimension_numbers<[1], [1], [0], [0], [0, 0, 1, 0], [], []>} : vector<8x8xbf16>, vector<8x8xbf16>, vector<8x8xf32> -> vector<8x8xf32>
    %cst_40 = arith.constant -1.000000e+30 : f32
    %54 = vector.broadcast %cst_40 : f32 to vector<8x8xf32>
    %55 = arith.select %9, %54, %53 : vector<8x8xi1>, vector<8x8xf32>
    %cst_41 = arith.constant dense<0xFF800000> : vector<8xf32>
    %56 = vector.multi_reduction <maximumf>, %55, %cst_41 [1] : vector<8x8xf32> to vector<8xf32>
    %57 = vector.shape_cast %56 : vector<8xf32> to vector<8x1xf32>
    %58 = vector.broadcast %57 : vector<8x1xf32> to vector<8x8xf32>
    %59 = arith.subf %55, %58 : vector<8x8xf32>
    %60 = math.exp %59 : vector<8x8xf32>
    %cst_42 = arith.constant dense<0.000000e+00> : vector<8xf32>
    %61 = vector.multi_reduction <add>, %60, %cst_42 [1] : vector<8x8xf32> to vector<8xf32>
    %62 = vector.shape_cast %61 : vector<8xf32> to vector<8x1xf32>
    %63 = tpu.reciprocal %62 {approx = true} : vector<8x1xf32> -> vector<8x1xf32>
    %64 = arith.mulf %62, %63 : vector<8x1xf32>
    %cst_43 = arith.constant 2.000000e+00 : f32
    %65 = vector.broadcast %cst_43 : f32 to vector<8x1xf32>
    %66 = arith.subf %65, %64 : vector<8x1xf32>
    %67 = arith.mulf %63, %66 : vector<8x1xf32>
    %68 = vector.broadcast %67 : vector<8x1xf32> to vector<8x8xf32>
    %69 = arith.mulf %60, %68 : vector<8x8xf32>
    %70 = arith.truncf %69 : vector<8x8xf32> to vector<8x8xbf16>
    %71 = arith.truncf %50 : vector<8x8xf32> to vector<8x8xbf16>
    %cst_44 = arith.constant dense<0.000000e+00> : vector<8x8xf32>
    %72 = tpu.matmul %70, %71, %cst_44 {dimension_numbers = #tpu.dot_dimension_numbers<[1], [0], [0], [1], [0, 0, 1, 1], [], []>} : vector<8x8xbf16>, vector<8x8xbf16>, vector<8x8xf32> -> vector<8x8xf32>
    %73 = arith.truncf %72 : vector<8x8xf32> to vector<8x8xbf16>
    %c2 = arith.constant 2 : index
    %c0_45 = arith.constant 0 : index
    %c0_46 = arith.constant 0 : index
    %74 = vector.load %arg6[%c2, %c0_45, %c0_46] : memref<4x32x8xbf16, #tpu.memory_space<vmem>>, vector<1x32x8xbf16>
    %75 = vector.shape_cast %74 : vector<1x32x8xbf16> to vector<32x8xbf16>
    %cst_47 = arith.constant dense<0.000000e+00> : vector<8x8xf32>
    %76 = tpu.matmul %1, %75, %cst_47 {dimension_numbers = #tpu.dot_dimension_numbers<[1], [0], [0], [1], [0, 0, 1, 1], [], []>} : vector<8x32xbf16>, vector<32x8xbf16>, vector<8x8xf32> -> vector<8x8xf32>
    %c2_48 = arith.constant 2 : index
    %c0_49 = arith.constant 0 : index
    %c0_50 = arith.constant 0 : index
    %77 = vector.load %arg7[%c2_48, %c0_49, %c0_50] : memref<4x32x8xbf16, #tpu.memory_space<vmem>>, vector<1x32x8xbf16>
    %78 = vector.shape_cast %77 : vector<1x32x8xbf16> to vector<32x8xbf16>
    %cst_51 = arith.constant dense<0.000000e+00> : vector<8x8xf32>
    %79 = tpu.matmul %3, %78, %cst_51 {dimension_numbers = #tpu.dot_dimension_numbers<[1], [0], [0], [1], [0, 0, 1, 1], [], []>} : vector<8x32xbf16>, vector<32x8xbf16>, vector<8x8xf32> -> vector<8x8xf32>
    %c2_52 = arith.constant 2 : index
    %c0_53 = arith.constant 0 : index
    %c0_54 = arith.constant 0 : index
    %80 = vector.load %arg8[%c2_52, %c0_53, %c0_54] : memref<4x32x8xbf16, #tpu.memory_space<vmem>>, vector<1x32x8xbf16>
    %81 = vector.shape_cast %80 : vector<1x32x8xbf16> to vector<32x8xbf16>
    %cst_55 = arith.constant dense<0.000000e+00> : vector<8x8xf32>
    %82 = tpu.matmul %5, %81, %cst_55 {dimension_numbers = #tpu.dot_dimension_numbers<[1], [0], [0], [1], [0, 0, 1, 1], [], []>} : vector<8x32xbf16>, vector<32x8xbf16>, vector<8x8xf32> -> vector<8x8xf32>
    %83 = arith.truncf %76 : vector<8x8xf32> to vector<8x8xbf16>
    %84 = arith.truncf %79 : vector<8x8xf32> to vector<8x8xbf16>
    %cst_56 = arith.constant dense<0.000000e+00> : vector<8x8xf32>
    %85 = tpu.matmul %83, %84, %cst_56 {dimension_numbers = #tpu.dot_dimension_numbers<[1], [1], [0], [0], [0, 0, 1, 0], [], []>} : vector<8x8xbf16>, vector<8x8xbf16>, vector<8x8xf32> -> vector<8x8xf32>
    %cst_57 = arith.constant -1.000000e+30 : f32
    %86 = vector.broadcast %cst_57 : f32 to vector<8x8xf32>
    %87 = arith.select %9, %86, %85 : vector<8x8xi1>, vector<8x8xf32>
    %cst_58 = arith.constant dense<0xFF800000> : vector<8xf32>
    %88 = vector.multi_reduction <maximumf>, %87, %cst_58 [1] : vector<8x8xf32> to vector<8xf32>
    %89 = vector.shape_cast %88 : vector<8xf32> to vector<8x1xf32>
    %90 = vector.broadcast %89 : vector<8x1xf32> to vector<8x8xf32>
    %91 = arith.subf %87, %90 : vector<8x8xf32>
    %92 = math.exp %91 : vector<8x8xf32>
    %cst_59 = arith.constant dense<0.000000e+00> : vector<8xf32>
    %93 = vector.multi_reduction <add>, %92, %cst_59 [1] : vector<8x8xf32> to vector<8xf32>
    %94 = vector.shape_cast %93 : vector<8xf32> to vector<8x1xf32>
    %95 = tpu.reciprocal %94 {approx = true} : vector<8x1xf32> -> vector<8x1xf32>
    %96 = arith.mulf %94, %95 : vector<8x1xf32>
    %cst_60 = arith.constant 2.000000e+00 : f32
    %97 = vector.broadcast %cst_60 : f32 to vector<8x1xf32>
    %98 = arith.subf %97, %96 : vector<8x1xf32>
    %99 = arith.mulf %95, %98 : vector<8x1xf32>
    %100 = vector.broadcast %99 : vector<8x1xf32> to vector<8x8xf32>
    %101 = arith.mulf %92, %100 : vector<8x8xf32>
    %102 = arith.truncf %101 : vector<8x8xf32> to vector<8x8xbf16>
    %103 = arith.truncf %82 : vector<8x8xf32> to vector<8x8xbf16>
    %cst_61 = arith.constant dense<0.000000e+00> : vector<8x8xf32>
    %104 = tpu.matmul %102, %103, %cst_61 {dimension_numbers = #tpu.dot_dimension_numbers<[1], [0], [0], [1], [0, 0, 1, 1], [], []>} : vector<8x8xbf16>, vector<8x8xbf16>, vector<8x8xf32> -> vector<8x8xf32>
    %105 = arith.truncf %104 : vector<8x8xf32> to vector<8x8xbf16>
    %c3 = arith.constant 3 : index
    %c0_62 = arith.constant 0 : index
    %c0_63 = arith.constant 0 : index
    %106 = vector.load %arg6[%c3, %c0_62, %c0_63] : memref<4x32x8xbf16, #tpu.memory_space<vmem>>, vector<1x32x8xbf16>
    %107 = vector.shape_cast %106 : vector<1x32x8xbf16> to vector<32x8xbf16>
    %cst_64 = arith.constant dense<0.000000e+00> : vector<8x8xf32>
    %108 = tpu.matmul %1, %107, %cst_64 {dimension_numbers = #tpu.dot_dimension_numbers<[1], [0], [0], [1], [0, 0, 1, 1], [], []>} : vector<8x32xbf16>, vector<32x8xbf16>, vector<8x8xf32> -> vector<8x8xf32>
    %c3_65 = arith.constant 3 : index
    %c0_66 = arith.constant 0 : index
    %c0_67 = arith.constant 0 : index
    %109 = vector.load %arg7[%c3_65, %c0_66, %c0_67] : memref<4x32x8xbf16, #tpu.memory_space<vmem>>, vector<1x32x8xbf16>
    %110 = vector.shape_cast %109 : vector<1x32x8xbf16> to vector<32x8xbf16>
    %cst_68 = arith.constant dense<0.000000e+00> : vector<8x8xf32>
    %111 = tpu.matmul %3, %110, %cst_68 {dimension_numbers = #tpu.dot_dimension_numbers<[1], [0], [0], [1], [0, 0, 1, 1], [], []>} : vector<8x32xbf16>, vector<32x8xbf16>, vector<8x8xf32> -> vector<8x8xf32>
    %c3_69 = arith.constant 3 : index
    %c0_70 = arith.constant 0 : index
    %c0_71 = arith.constant 0 : index
    %112 = vector.load %arg8[%c3_69, %c0_70, %c0_71] : memref<4x32x8xbf16, #tpu.memory_space<vmem>>, vector<1x32x8xbf16>
    %113 = vector.shape_cast %112 : vector<1x32x8xbf16> to vector<32x8xbf16>
    %cst_72 = arith.constant dense<0.000000e+00> : vector<8x8xf32>
    %114 = tpu.matmul %5, %113, %cst_72 {dimension_numbers = #tpu.dot_dimension_numbers<[1], [0], [0], [1], [0, 0, 1, 1], [], []>} : vector<8x32xbf16>, vector<32x8xbf16>, vector<8x8xf32> -> vector<8x8xf32>
    %115 = arith.truncf %108 : vector<8x8xf32> to vector<8x8xbf16>
    %116 = arith.truncf %111 : vector<8x8xf32> to vector<8x8xbf16>
    %cst_73 = arith.constant dense<0.000000e+00> : vector<8x8xf32>
    %117 = tpu.matmul %115, %116, %cst_73 {dimension_numbers = #tpu.dot_dimension_numbers<[1], [1], [0], [0], [0, 0, 1, 0], [], []>} : vector<8x8xbf16>, vector<8x8xbf16>, vector<8x8xf32> -> vector<8x8xf32>
    %cst_74 = arith.constant -1.000000e+30 : f32
    %118 = vector.broadcast %cst_74 : f32 to vector<8x8xf32>
    %119 = arith.select %9, %118, %117 : vector<8x8xi1>, vector<8x8xf32>
    %cst_75 = arith.constant dense<0xFF800000> : vector<8xf32>
    %120 = vector.multi_reduction <maximumf>, %119, %cst_75 [1] : vector<8x8xf32> to vector<8xf32>
    %121 = vector.shape_cast %120 : vector<8xf32> to vector<8x1xf32>
    %122 = vector.broadcast %121 : vector<8x1xf32> to vector<8x8xf32>
    %123 = arith.subf %119, %122 : vector<8x8xf32>
    %124 = math.exp %123 : vector<8x8xf32>
    %cst_76 = arith.constant dense<0.000000e+00> : vector<8xf32>
    %125 = vector.multi_reduction <add>, %124, %cst_76 [1] : vector<8x8xf32> to vector<8xf32>
    %126 = vector.shape_cast %125 : vector<8xf32> to vector<8x1xf32>
    %127 = tpu.reciprocal %126 {approx = true} : vector<8x1xf32> -> vector<8x1xf32>
    %128 = arith.mulf %126, %127 : vector<8x1xf32>
    %cst_77 = arith.constant 2.000000e+00 : f32
    %129 = vector.broadcast %cst_77 : f32 to vector<8x1xf32>
    %130 = arith.subf %129, %128 : vector<8x1xf32>
    %131 = arith.mulf %127, %130 : vector<8x1xf32>
    %132 = vector.broadcast %131 : vector<8x1xf32> to vector<8x8xf32>
    %133 = arith.mulf %124, %132 : vector<8x8xf32>
    %134 = arith.truncf %133 : vector<8x8xf32> to vector<8x8xbf16>
    %135 = arith.truncf %114 : vector<8x8xf32> to vector<8x8xbf16>
    %cst_78 = arith.constant dense<0.000000e+00> : vector<8x8xf32>
    %136 = tpu.matmul %134, %135, %cst_78 {dimension_numbers = #tpu.dot_dimension_numbers<[1], [0], [0], [1], [0, 0, 1, 1], [], []>} : vector<8x8xbf16>, vector<8x8xbf16>, vector<8x8xf32> -> vector<8x8xf32>
    %137 = arith.truncf %136 : vector<8x8xf32> to vector<8x8xbf16>
    %138 = tpu.concatenate %41, %73, %105, %137 in 1 : vector<8x8xbf16>, vector<8x8xbf16>, vector<8x8xbf16>, vector<8x8xbf16> -> vector<8x32xbf16>
    %c0_79 = arith.constant 0 : index
    %c0_80 = arith.constant 0 : index
    %139 = vector.load %arg9[%c0_79, %c0_80] : memref<32x32xbf16, #tpu.memory_space<vmem>>, vector<32x32xbf16>
    %cst_81 = arith.constant dense<0.000000e+00> : vector<8x32xf32>
    %140 = tpu.matmul %138, %139, %cst_81 {dimension_numbers = #tpu.dot_dimension_numbers<[1], [0], [0], [1], [0, 0, 1, 1], [], []>} : vector<8x32xbf16>, vector<32x32xbf16>, vector<8x32xf32> -> vector<8x32xf32>
    %c0_82 = arith.constant 0 : index
    %c0_83 = arith.constant 0 : index
    %c0_84 = arith.constant 0 : index
    %141 = vector.load %arg10[%c0_82, %c0_83, %c0_84] : memref<1x8x32xf32, #tpu.memory_space<vmem>>, vector<1x8x32xf32>
    %142 = vector.shape_cast %141 : vector<1x8x32xf32> to vector<8x32xf32>
    %143 = vector.shape_cast %140 : vector<8x32xf32> to vector<1x8x32xf32>
    tpu.vector_store %arg10[%c0_82, %c0_83, %c0_84], %143 {strides = array<i32>} : memref<1x8x32xf32, #tpu.memory_space<vmem>>, vector<1x8x32xf32>,
    return
  }
  func.func @transform_0(%arg0: i32, %arg1: i32) -> (i32, i32, i32) {
    %c0_i32 = arith.constant 0 : i32
    %c0_i32_0 = arith.constant 0 : i32
    return %arg0, %arg1, %c0_i32 : i32, i32, i32
  }
  func.func @transform_1(%arg0: i32, %arg1: i32) -> (i32, i32, i32) {
    %c0_i32 = arith.constant 0 : i32
    %c0_i32_0 = arith.constant 0 : i32
    return %arg0, %arg1, %c0_i32 : i32, i32, i32
  }
  func.func @transform_2(%arg0: i32, %arg1: i32) -> (i32, i32, i32) {
    %c0_i32 = arith.constant 0 : i32
    %c0_i32_0 = arith.constant 0 : i32
    %c0_i32_1 = arith.constant 0 : i32
    return %arg0, %c0_i32, %c0_i32_0 : i32, i32, i32
  }
  func.func @transform_3(%arg0: i32, %arg1: i32) -> (i32, i32, i32) {
    %c0_i32 = arith.constant 0 : i32
    %c0_i32_0 = arith.constant 0 : i32
    %c0_i32_1 = arith.constant 0 : i32
    return %arg0, %c0_i32, %c0_i32_0 : i32, i32, i32
  }
  func.func @transform_4(%arg0: i32, %arg1: i32) -> (i32, i32, i32) {
    %c0_i32 = arith.constant 0 : i32
    %c0_i32_0 = arith.constant 0 : i32
    %c0_i32_1 = arith.constant 0 : i32
    %c0_i32_2 = arith.constant 0 : i32
    return %c0_i32, %c0_i32_0, %c0_i32_1 : i32, i32, i32
  }
  func.func @transform_5(%arg0: i32, %arg1: i32) -> (i32, i32, i32) {
    %c0_i32 = arith.constant 0 : i32
    %c0_i32_0 = arith.constant 0 : i32
    %c0_i32_1 = arith.constant 0 : i32
    %c0_i32_2 = arith.constant 0 : i32
    return %c0_i32, %c0_i32_0, %c0_i32_1 : i32, i32, i32
  }
  func.func @transform_6(%arg0: i32, %arg1: i32) -> (i32, i32, i32) {
    %c0_i32 = arith.constant 0 : i32
    %c0_i32_0 = arith.constant 0 : i32
    %c0_i32_1 = arith.constant 0 : i32
    %c0_i32_2 = arith.constant 0 : i32
    return %c0_i32, %c0_i32_0, %c0_i32_1 : i32, i32, i32
  }
  func.func @transform_7(%arg0: i32, %arg1: i32) -> (i32, i32) {
    %c0_i32 = arith.constant 0 : i32
    %c0_i32_0 = arith.constant 0 : i32
    %c0_i32_1 = arith.constant 0 : i32
    return %c0_i32, %c0_i32_0 : i32, i32
  }
  func.func @transform_8(%arg0: i32, %arg1: i32) -> (i32, i32, i32) {
    %c0_i32 = arith.constant 0 : i32
    %c0_i32_0 = arith.constant 0 : i32
    return %arg0, %arg1, %c0_i32 : i32, i32, i32
  }
}

</mosaic_0001>

<llo_original>
// kernel: tpu_custom_call.1
$region0: #{tpu_custom_call.1}
  #allocation0 [shape = 'u32[]', space=smem, size = 0x4, offset = 0x4, fixed_abs, tag = 'smem constant byte address 0x4 - core index']
  #allocation1 [shape = 'u32[144,128]{1,0:T(1,128)}', space=vmem, size = 0x12000, scoped, tag = 'internal scratch']
  %s0 = inlined_call_operand.vmem [shape: s8[2,8,8], index: 0, kind: input, shape index: {}]
  %s1 = inlined_call_operand.vmem [shape: bf16[2,8,32], index: 1, kind: input, shape index: {}]
  %s2 = inlined_call_operand.vmem [shape: bf16[2,8,32], index: 2, kind: input, shape index: {}]
  %s3 = inlined_call_operand.vmem [shape: bf16[2,8,32], index: 3, kind: input, shape index: {}]
  %s4 = inlined_call_operand.vmem [shape: bf16[4,32,8], index: 4, kind: input, shape index: {}]
  %s5 = inlined_call_operand.vmem [shape: bf16[4,32,8], index: 5, kind: input, shape index: {}]
  %s6 = inlined_call_operand.vmem [shape: bf16[4,32,8], index: 6, kind: input, shape index: {}]
  %s7 = inlined_call_operand.vmem [shape: bf16[32,32], index: 7, kind: input, shape index: {}]
  %s8 = inlined_call_operand.hbm [shape: f32[2,8,32], index: 8, kind: output, shape index: {}]
  %s9 = sld [smem:[#allocation0]]
  $region65: #{tpu_custom_call.1} parent=0
    _
  %s11 = ssub.s32 1, %s9
  %s12 = scalar_select 0, %s11, %s9
  $region1: #{tpu_custom_call.1} parent=0
    #allocation2 [shape = 'u8[8192]{0}', space=vmem, size = 0x2000, scoped, tag = 'output window, operand 0']
    #allocation3 [shape = 's32[2]{0}', space=sflag, size = 0x8, scoped, tag = 'scoped memory for tpu_custom_call.1']
    %13 = vsyncpa [#allocation3], 0
    %s14 = scalar_lea.sflag [#allocation3], 1
    %15 = vsyncpa %s14, 0
    loop: start=0, step=1, limit=4
    $region2: #{tpu_custom_call.1} parent=1 // loop_pre_header
      _
    $region3: #{tpu_custom_call.1} parent=1 // loop_header
      %s17 = sphi 0, %s21
      %p18 = scmp.ge.s32.totalorder %s17, 4
      %s24 = sphi 0, %s36
      %s25 = sphi 0, %s32
      %s26 = sphi 0, %s24
      %s27 = sphi 0, %s25
      %s28 = sphi 0, %s26
      %s29 = sphi 0, %s27
      %s41 = sphi 0, %s43
      %s44 = sphi 0, %s41
      %s45 = sphi 0, %s44
      %s61 = sphi 0, %s45
      %s69 = sphi 0, %s71
      %s72 = sphi 0, %s69
      %s73 = sphi 0, %s72
      %s89 = sphi 0, %s73
      %s95 = sphi 0, %s97
      %s98 = sphi 0, %s95
      %s99 = sphi 0, %s98
      %s115 = sphi 0, %s99
      %s121 = sphi 0, %s123
      %s124 = sphi 0, %s121
      %s125 = sphi 0, %s124
      %s141 = sphi 0, %s125
      %s145 = sphi 0, %s145
      %s147 = sphi 0, %s145
      %s148 = sphi 0, %s147
      %s162 = sphi 0, %s148
      %s166 = sphi 0, %s166
      %s168 = sphi 0, %s166
      %s169 = sphi 0, %s168
      %s183 = sphi 0, %s169
      %s187 = sphi 0, %s187
      %s189 = sphi 0, %s187
      %s190 = sphi 0, %s189
      %s204 = sphi 0, %s190
      %s208 = sphi 0, %s208
      %s210 = sphi 0, %s208
      %s211 = sphi 0, %s210
      %s225 = sphi 0, %s211
      %s233 = sphi 0, %s235
      %s236 = sphi 0, %s233
      %s237 = sphi 0, %s236
      %s253 = sphi 0, %s237
    $region4: #{tpu_custom_call.1} parent=1 // loop_header_branch
      %20 = sbr.rel (%p18) target = $region8
    $region5: #{tpu_custom_call.1} parent=1 // loop_body
      %s22 = ssub.s32 %s17, 1
      %s23 = ssub.s32 %s17, 2
      %s30 = sadd.s32 1, %s25
      %p31 = scmp.ge.s32.totalorder %s30, 1
      %s32 = scalar_select %p31, 0, %s30
      %s33 = sadd.s32 1, %s24
      %s34 = scalar_select %p31, %s33, %s24
      %p35 = scmp.ge.s32.totalorder %s34, 2
      %s36 = scalar_select %p35, 0, %s34
      %s37 = ssub.s32 %s24, %s36
      %s38 = ssub.s32 %s25, %s32
      %s39 = sor.u32 %s37, %s38
      %p40 = scmp.eq.s32.totalorder %s39, 0
      %s42 = sadd.s32 %s41, 1
      %s43 = scalar_select %p40, %s41, %s42
      %p46 = pneg %p40
      %p47 = scmp.eq.s32.totalorder %s17, 1
      %p48 = por %p46, %p47
      %p49 = scmp.ne.s32.totalorder %s41, %s44
      %p50 = scmp.eq.s32.totalorder %s17, 0
      %p51 = por %p49, %p50
      %p52 = scmp.ne.s32.totalorder %s41, %s44
      %p53 = scmp.eq.s32.totalorder %s22, 1
      %p54 = por %p52, %p53
      %p55 = scmp.ne.s32.totalorder %s44, %s45
      %p56 = scmp.eq.s32.totalorder %s22, 0
      %p57 = por %p55, %p56
      %p58 = scmp.ne.s32.totalorder %s44, %s45
      %p59 = scmp.eq.s32.totalorder %s23, 1
      %p60 = por %p58, %p59
      %p62 = scmp.ne.s32.totalorder %s45, %s61
      %p63 = scmp.eq.s32.totalorder %s23, 0
      %p64 = por %p62, %p63
      %s65 = ssub.s32 %s24, %s36
      %s66 = ssub.s32 %s25, %s32
      %s67 = sor.u32 %s65, %s66
      %p68 = scmp.eq.s32.totalorder %s67, 0
      %s70 = sadd.s32 %s69, 1
      %s71 = scalar_select %p68, %s69, %s70
      %p74 = pneg %p68
      %p75 = scmp.eq.s32.totalorder %s17, 1
      %p76 = por %p74, %p75
      %p77 = scmp.ne.s32.totalorder %s69, %s72
      %p78 = scmp.eq.s32.totalorder %s17, 0
      %p79 = por %p77, %p78
      %p80 = scmp.ne.s32.totalorder %s69, %s72
      %p81 = scmp.eq.s32.totalorder %s22, 1
      %p82 = por %p80, %p81
      %p83 = scmp.ne.s32.totalorder %s72, %s73
      %p84 = scmp.eq.s32.totalorder %s22, 0
      %p85 = por %p83, %p84
      %p86 = scmp.ne.s32.totalorder %s72, %s73
      %p87 = scmp.eq.s32.totalorder %s23, 1
      %p88 = por %p86, %p87
      %p90 = scmp.ne.s32.totalorder %s73, %s89
      %p91 = scmp.eq.s32.totalorder %s23, 0
      %p92 = por %p90, %p91
      %s93 = ssub.s32 %s24, %s36
      %p94 = scmp.eq.s32.totalorder %s93, 0
      %s96 = sadd.s32 %s95, 1
      %s97 = scalar_select %p94, %s95, %s96
      %p100 = pneg %p94
      %p101 = scmp.eq.s32.totalorder %s17, 1
      %p102 = por %p100, %p101
      %p103 = scmp.ne.s32.totalorder %s95, %s98
      %p104 = scmp.eq.s32.totalorder %s17, 0
      %p105 = por %p103, %p104
      %p106 = scmp.ne.s32.totalorder %s95, %s98
      %p107 = scmp.eq.s32.totalorder %s22, 1
      %p108 = por %p106, %p107
      %p109 = scmp.ne.s32.totalorder %s98, %s99
      %p110 = scmp.eq.s32.totalorder %s22, 0
      %p111 = por %p109, %p110
      %p112 = scmp.ne.s32.totalorder %s98, %s99
      %p113 = scmp.eq.s32.totalorder %s23, 1
      %p114 = por %p112, %p113
      %p116 = scmp.ne.s32.totalorder %s99, %s115
      %p117 = scmp.eq.s32.totalorder %s23, 0
      %p118 = por %p116, %p117
      %s119 = ssub.s32 %s24, %s36
      %p120 = scmp.eq.s32.totalorder %s119, 0
      %s122 = sadd.s32 %s121, 1
      %s123 = scalar_select %p120, %s121, %s122
      %p126 = pneg %p120
      %p127 = scmp.eq.s32.totalorder %s17, 1
      %p128 = por %p126, %p127
      %p129 = scmp.ne.s32.totalorder %s121, %s124
      %p130 = scmp.eq.s32.totalorder %s17, 0
      %p131 = por %p129, %p130
      %p132 = scmp.ne.s32.totalorder %s121, %s124
      %p133 = scmp.eq.s32.totalorder %s22, 1
      %p134 = por %p132, %p133
      %p135 = scmp.ne.s32.totalorder %s124, %s125
      %p136 = scmp.eq.s32.totalorder %s22, 0
      %p137 = por %p135, %p136
      %p138 = scmp.ne.s32.totalorder %s124, %s125
      %p139 = scmp.eq.s32.totalorder %s23, 1
      %p140 = por %p138, %p139
      %p142 = scmp.ne.s32.totalorder %s125, %s141
      %p143 = scmp.eq.s32.totalorder %s23, 0
      %p144 = por %p142, %p143
      %s146 = sadd.s32 %s145, 1
      %p149 = scmp.eq.s32.totalorder %s17, 1
      %p150 = scmp.ne.s32.totalorder %s145, %s147
      %p151 = scmp.eq.s32.totalorder %s17, 0
      %p152 = por %p150, %p151
      %p153 = scmp.ne.s32.totalorder %s145, %s147
      %p154 = scmp.eq.s32.totalorder %s22, 1
      %p155 = por %p153, %p154
      %p156 = scmp.ne.s32.totalorder %s147, %s148
      %p157 = scmp.eq.s32.totalorder %s22, 0
      %p158 = por %p156, %p157
      %p159 = scmp.ne.s32.totalorder %s147, %s148
      %p160 = scmp.eq.s32.totalorder %s23, 1
      %p161 = por %p159, %p160
      %p163 = scmp.ne.s32.totalorder %s148, %s162
      %p164 = scmp.eq.s32.totalorder %s23, 0
      %p165 = por %p163, %p164
      %s167 = sadd.s32 %s166, 1
      %p170 = scmp.eq.s32.totalorder %s17, 1
      %p171 = scmp.ne.s32.totalorder %s166, %s168
      %p172 = scmp.eq.s32.totalorder %s17, 0
      %p173 = por %p171, %p172
      %p174 = scmp.ne.s32.totalorder %s166, %s168
      %p175 = scmp.eq.s32.totalorder %s22, 1
      %p176 = por %p174, %p175
      %p177 = scmp.ne.s32.totalorder %s168, %s169
      %p178 = scmp.eq.s32.totalorder %s22, 0
      %p179 = por %p177, %p178
      %p180 = scmp.ne.s32.totalorder %s168, %s169
      %p181 = scmp.eq.s32.totalorder %s23, 1
      %p182 = por %p180, %p181
      %p184 = scmp.ne.s32.totalorder %s169, %s183
      %p185 = scmp.eq.s32.totalorder %s23, 0
      %p186 = por %p184, %p185
      %s188 = sadd.s32 %s187, 1
      %p191 = scmp.eq.s32.totalorder %s17, 1
      %p192 = scmp.ne.s32.totalorder %s187, %s189
      %p193 = scmp.eq.s32.totalorder %s17, 0
      %p194 = por %p192, %p193
      %p195 = scmp.ne.s32.totalorder %s187, %s189
      %p196 = scmp.eq.s32.totalorder %s22, 1
      %p197 = por %p195, %p196
      %p198 = scmp.ne.s32.totalorder %s189, %s190
      %p199 = scmp.eq.s32.totalorder %s22, 0
      %p200 = por %p198, %p199
      %p201 = scmp.ne.s32.totalorder %s189, %s190
      %p202 = scmp.eq.s32.totalorder %s23, 1
      %p203 = por %p201, %p202
      %p205 = scmp.ne.s32.totalorder %s190, %s204
      %p206 = scmp.eq.s32.totalorder %s23, 0
      %p207 = por %p205, %p206
      %s209 = sadd.s32 %s208, 1
      %p212 = scmp.eq.s32.totalorder %s17, 1
      %p213 = scmp.ne.s32.totalorder %s208, %s210
      %p214 = scmp.eq.s32.totalorder %s17, 0
      %p215 = por %p213, %p214
      %p216 = scmp.ne.s32.totalorder %s208, %s210
      %p217 = scmp.eq.s32.totalorder %s22, 1
      %p218 = por %p216, %p217
      %p219 = scmp.ne.s32.totalorder %s210, %s211
      %p220 = scmp.eq.s32.totalorder %s22, 0
      %p221 = por %p219, %p220
      %p222 = scmp.ne.s32.totalorder %s210, %s211
      %p223 = scmp.eq.s32.totalorder %s23, 1
      %p224 = por %p222, %p223
      %p226 = scmp.ne.s32.totalorder %s211, %s225
      %p227 = scmp.eq.s32.totalorder %s23, 0
      %p228 = por %p226, %p227
      %s229 = ssub.s32 %s24, %s36
      %s230 = ssub.s32 %s25, %s32
      %s231 = sor.u32 %s229, %s230
      %p232 = scmp.eq.s32.totalorder %s231, 0
      %s234 = sadd.s32 %s233, 1
      %s235 = scalar_select %p232, %s233, %s234
      %p238 = pneg %p232
      %p239 = scmp.eq.s32.totalorder %s17, 1
      %p240 = por %p238, %p239
      %p241 = scmp.ne.s32.totalorder %s233, %s236
      %p242 = scmp.eq.s32.totalorder %s17, 0
      %p243 = por %p241, %p242
      %p244 = scmp.ne.s32.totalorder %s233, %s236
      %p245 = scmp.eq.s32.totalorder %s22, 1
      %p246 = por %p244, %p245
      %p247 = scmp.ne.s32.totalorder %s236, %s237
      %p248 = scmp.eq.s32.totalorder %s22, 0
      %p249 = por %p247, %p248
      %p250 = scmp.ne.s32.totalorder %s236, %s237
      %p251 = scmp.eq.s32.totalorder %s23, 1
      %p252 = por %p250, %p251
      %p254 = scmp.ne.s32.totalorder %s237, %s253
      %p255 = scmp.eq.s32.totalorder %s23, 0
      %p256 = por %p254, %p255
      %p257 = scmp.le.s32.totalorder 1, %s17
      %p258 = scmp.lt.s32.totalorder %s17, 3
      %p259 = pnand %p257, %p258
      %p260 = pneg %p259
      // Predicated region
      $region9: #{tpu_custom_call.1} parent=5 // pred_check
        _
      $region10: #{tpu_custom_call.1} parent=5 // pred_check_branch
        %262 = sbr.rel (%p259) target = $region12
      $region11: #{tpu_custom_call.1} parent=5 // pred_region
        %s263 = ssub.s32 %s17, 1
        // Predicated region
        $region13: #{tpu_custom_call.1} parent=11 // pred_check
          %p264 = pneg %p158
        $region14: #{tpu_custom_call.1} parent=11 // pred_check_branch
          %266 = sbr.rel (%p264) target = $region16
        $region15: #{tpu_custom_call.1} parent=11 // pred_region
          _
        $region16: #{tpu_custom_call.1} parent=11 // pred_fallthru
          _
        // Predicated region
        $region17: #{tpu_custom_call.1} parent=11 // pred_check
          %p267 = pneg %p179
        $region18: #{tpu_custom_call.1} parent=11 // pred_check_branch
          %269 = sbr.rel (%p267) target = $region20
        $region19: #{tpu_custom_call.1} parent=11 // pred_region
          _
        $region20: #{tpu_custom_call.1} parent=11 // pred_fallthru
          _
        // Predicated region
        $region21: #{tpu_custom_call.1} parent=11 // pred_check
          %p270 = pneg %p200
        $region22: #{tpu_custom_call.1} parent=11 // pred_check_branch
          %272 = sbr.rel (%p270) target = $region24
        $region23: #{tpu_custom_call.1} parent=11 // pred_region
          _
        $region24: #{tpu_custom_call.1} parent=11 // pred_fallthru
          _
        // Predicated region
        $region25: #{tpu_custom_call.1} parent=11 // pred_check
          %p273 = pneg %p221
        $region26: #{tpu_custom_call.1} parent=11 // pred_check_branch
          %275 = sbr.rel (%p273) target = $region28
        $region27: #{tpu_custom_call.1} parent=11 // pred_region
          _
        $region28: #{tpu_custom_call.1} parent=11 // pred_fallthru
          _
      $region12: #{tpu_custom_call.1} parent=5 // pred_fallthru
        _
      %p276 = scmp.lt.s32.totalorder %s17, 2
      // Predicated region
      $region29: #{tpu_custom_call.1} parent=5 // pred_check
        %p277 = pneg %p276
      $region30: #{tpu_custom_call.1} parent=5 // pred_check_branch
        %279 = sbr.rel (%p277) target = $region32
      $region31: #{tpu_custom_call.1} parent=5 // pred_region
        // Predicated region
        $region33: #{tpu_custom_call.1} parent=31 // pred_check
          %p280 = pneg %p51
        $region34: #{tpu_custom_call.1} parent=31 // pred_check_branch
          %282 = sbr.rel (%p280) target = $region36
        $region35: #{tpu_custom_call.1} parent=31 // pred_region
          %p283 = scmp.lt.s32.totalorder %s24, 1
          %s284 = scalar_select %p283, %s24, 1
          %p285 = scmp.lt.s32.totalorder %s25, 0
          %s286 = scalar_select %p285, %s25, 0
          %s287 = sadd.s32 %s286, %s284
          %s288 = smul.addr %s287, 2
          %s289 = scalar_lea.vmem %s0, %s288
        $region36: #{tpu_custom_call.1} parent=31 // pred_fallthru
          _
        // Predicated region
        $region37: #{tpu_custom_call.1} parent=31 // pred_check
          %p290 = pneg %p79
        $region38: #{tpu_custom_call.1} parent=31 // pred_check_branch
          %292 = sbr.rel (%p290) target = $region40
        $region39: #{tpu_custom_call.1} parent=31 // pred_region
          %p293 = scmp.lt.s32.totalorder %s24, 1
          %s294 = scalar_select %p293, %s24, 1
          %p295 = scmp.lt.s32.totalorder %s25, 0
          %s296 = scalar_select %p295, %s25, 0
          %s297 = sadd.s32 %s296, %s294
          %s298 = smul.addr %s297, 4
          %s299 = scalar_lea.vmem %s1, %s298
        $region40: #{tpu_custom_call.1} parent=31 // pred_fallthru
          _
        // Predicated region
        $region41: #{tpu_custom_call.1} parent=31 // pred_check
          %p300 = pneg %p105
        $region42: #{tpu_custom_call.1} parent=31 // pred_check_branch
          %302 = sbr.rel (%p300) target = $region44
        $region43: #{tpu_custom_call.1} parent=31 // pred_region
          %p303 = scmp.lt.s32.totalorder %s24, 1
          %s304 = scalar_select %p303, %s24, 1
          %s305 = smul.addr %s304, 4
          %s306 = scalar_lea.vmem %s2, %s305
        $region44: #{tpu_custom_call.1} parent=31 // pred_fallthru
          _
        // Predicated region
        $region45: #{tpu_custom_call.1} parent=31 // pred_check
          %p307 = pneg %p131
        $region46: #{tpu_custom_call.1} parent=31 // pred_check_branch
          %309 = sbr.rel (%p307) target = $region48
        $region47: #{tpu_custom_call.1} parent=31 // pred_region
          %p310 = scmp.lt.s32.totalorder %s24, 1
          %s311 = scalar_select %p310, %s24, 1
          %s312 = smul.addr %s311, 4
          %s313 = scalar_lea.vmem %s3, %s312
        $region48: #{tpu_custom_call.1} parent=31 // pred_fallthru
          _
      $region32: #{tpu_custom_call.1} parent=5 // pred_fallthru
        _
      %p314 = scmp.le.s32.totalorder 1, %s17
      %p315 = scmp.lt.s32.totalorder %s17, 3
      %p316 = pnand %p314, %p315
      %p317 = pneg %p316
      // Predicated region
      $region49: #{tpu_custom_call.1} parent=5 // pred_check
        _
      $region50: #{tpu_custom_call.1} parent=5 // pred_check_branch
        %319 = sbr.rel (%p316) target = $region52
      $region51: #{tpu_custom_call.1} parent=5 // pred_region
        %s320 = ssub.s32 %s17, 1
        %p321 = scmp.lt.s32.totalorder %s26, 1
        %s322 = scalar_select %p321, %s26, 1
        %p323 = scmp.lt.s32.totalorder %s27, 0
        %s324 = scalar_select %p323, %s27, 0
        %s325 = sadd.s32 %s324, %s322
        %s326 = smul.addr %s325, 2
        %s327 = scalar_lea.vmem %s0, %s326
        %p328 = pneg %p57
        %p329 = pneg %p54
        %p330 = scmp.lt.s32.totalorder %s26, 1
        %s331 = scalar_select %p330, %s26, 1
        %p332 = scmp.lt.s32.totalorder %s27, 0
        %s333 = scalar_select %p332, %s27, 0
        %s334 = sadd.s32 %s333, %s331
        %s335 = smul.addr %s334, 4
        %s336 = scalar_lea.vmem %s1, %s335
        %p337 = pneg %p85
        %p338 = pneg %p82
        %p339 = scmp.lt.s32.totalorder %s26, 1
        %s340 = scalar_select %p339, %s26, 1
        %s341 = smul.addr %s340, 4
        %s342 = scalar_lea.vmem %s2, %s341
        %p343 = pneg %p111
        %p344 = pneg %p108
        %p345 = scmp.lt.s32.totalorder %s26, 1
        %s346 = scalar_select %p345, %s26, 1
        %s347 = smul.addr %s346, 4
        %s348 = scalar_lea.vmem %s3, %s347
        %p349 = pneg %p137
        %p350 = pneg %p134
        %p351 = pneg %p158
        %p352 = pneg %p155
        %p353 = pneg %p179
        %p354 = pneg %p176
        %p355 = pneg %p200
        %p356 = pneg %p197
        %p357 = pneg %p221
        %p358 = pneg %p218
        %p359 = pneg %p249
        %p360 = pneg %p246
        %s361 = sand.u32 %s236, 1
        %s362 = scalar_lea.sflag [#allocation3], %s361
        %s363 = sand.u32 %s236, 1
        %s364 = smul.addr %s363, 8
        %s365 = scalar_lea.vmem [#allocation2], %s364
        %p366 = scmp.lt.s32.totalorder %s26, 1
        %s367 = scalar_select %p366, %s26, 1
        %p368 = scmp.lt.s32.totalorder %s27, 0
        %s369 = scalar_select %p368, %s27, 0
        %s370 = sadd.s32 %s369, %s367
        %s371 = smul.addr %s370, 2
        %s372 = scalar_lea.vmem %s0, %s371
        %p373 = scmp.lt.s32.totalorder %s26, 1
        %s374 = scalar_select %p373, %s26, 1
        %p375 = scmp.lt.s32.totalorder %s27, 0
        %s376 = scalar_select %p375, %s27, 0
        %s377 = sadd.s32 %s376, %s374
        %s378 = smul.addr %s377, 4
        %s379 = scalar_lea.vmem %s1, %s378
        %p380 = scmp.lt.s32.totalorder %s26, 1
        %s381 = scalar_select %p380, %s26, 1
        %s382 = smul.addr %s381, 4
        %s383 = scalar_lea.vmem %s2, %s382
        %p384 = scmp.lt.s32.totalorder %s26, 1
        %s385 = scalar_select %p384, %s26, 1
        %s386 = smul.addr %s385, 4
        %s387 = scalar_lea.vmem %s3, %s386
        %v391 = vld [vmem:[%s379] sm:$0xf]
        %v392 = vld [vmem:[%s383] sm:$0xf]
        %v393 = vld [vmem:[%s387] sm:$0xf]
        %v394 = vld [vmem:[%s372] sm:$0x3]
        %vm395 = vnez %v394
        %v396 = vld [vmem:[%s4] sm:$0xf]
        %v397 = vld [vmem:[%s4 + $0x4] sm:$0xf]
        %v398 = vld [vmem:[%s4 + $0x8] sm:$0xf]
        %v399 = vld [vmem:[%s4 + $0xc] sm:$0xf]
        %v404 = vunpack.c.l.b16 %v396
        %v405 = vunpack.c.l.b16 %v397
        %v406 = vunpack.c.l.b16 %v398
        %v407 = vunpack.c.l.b16 %v399
        %v408 = vpack.c.b16 %v405, %v404
        %v409 = vpack.c.b16 %v407, %v406
        %vm412 = vcmask 261120
        %v414 = vsel %vm412, %v391, 0
        %416 = vmatprep.subr.bf16.mxu0 0
        %417 = vmatpush1.bf16.msra.mxu0 0
        %418 = vmatprep.subr.bf16.mxu0 0
        %419 = vmatpush1.bf16.msra.mxu0 0
        %420 = vmatprep.subr.bf16.mxu0 0
        %421 = vmatpush1.bf16.msra.mxu0 0
        %422 = vmatprep.subr.bf16.mxu0 0
        %423 = vmatpush1.bf16.msra.mxu0 0
        %424 = vmatprep.subr.bf16.mxu0 0
        %425 = vmatpush1.bf16.msra.mxu0 0
        %426 = vmatprep.subr.bf16.mxu0 0
        %427 = vmatpush1.bf16.msra.mxu0 0
        %428 = vmatprep.subr.bf16.mxu0 0
        %429 = vmatpush1.bf16.msra.mxu0 %v409
        %430 = vmatprep.subr.bf16.mxu0 0
        %431 = vmatpush1.bf16.msra.mxu0 %v408
        %432 = vmatprep.subr.bf16.mxu0 0
        %433 = vmatpush2.bf16.msra.mxu0 0
        %434 = vmatprep.subr.bf16.mxu0 0
        %435 = vmatpush2.bf16.msra.mxu0 0
        %436 = vmatprep.subr.bf16.mxu0 0
        %437 = vmatpush2.bf16.msra.mxu0 0
        %438 = vmatprep.subr.bf16.mxu0 0
        %439 = vmatpush2.bf16.msra.mxu0 0
        %440 = vmatprep.subr.bf16.mxu0 0
        %441 = vmatpush2.bf16.msra.mxu0 0
        %442 = vmatprep.subr.bf16.mxu0 0
        %443 = vmatpush2.bf16.msra.mxu0 0
        %444 = vmatprep.subr.bf16.mxu0 0
        %445 = vmatpush2.bf16.msra.mxu0 0
        %446 = vmatprep.subr.bf16.mxu0 0
        %447 = vmatpush2.bf16.msra.mxu0 0
        %448 = vmatprep.mubr.bf16.mxu0 0
        %449 = vmatmul.mubr.bf16.gmra.mxu0 %v414
        %v450 = vpop.f32.mrf.mxu0
        %v451 = vadd.f32 0.0, %v450
        %v452 = vpop.f32.mrf.mxu0
        %v453 = vpop.f32.mrf.mxu0
        %v454 = vpop.f32.mrf.mxu0
        %455 = vdwg.mxu0
        %v456 = vld [vmem:[%s5] sm:$0xf]
        %v457 = vld [vmem:[%s5 + $0x4] sm:$0xf]
        %v458 = vld [vmem:[%s5 + $0x8] sm:$0xf]
        %v459 = vld [vmem:[%s5 + $0xc] sm:$0xf]
        %v464 = vunpack.c.l.b16 %v456
        %v465 = vunpack.c.l.b16 %v457
        %v466 = vunpack.c.l.b16 %v458
        %v467 = vunpack.c.l.b16 %v459
        %v468 = vpack.c.b16 %v465, %v464
        %v469 = vpack.c.b16 %v467, %v466
        %v473 = vsel %vm412, %v392, 0
        %475 = vmatprep.subr.bf16.mxu0 0
        %476 = vmatpush1.bf16.msra.mxu0 0
        %477 = vmatprep.subr.bf16.mxu0 0
        %478 = vmatpush1.bf16.msra.mxu0 0
        %479 = vmatprep.subr.bf16.mxu0 0
        %480 = vmatpush1.bf16.msra.mxu0 0
        %481 = vmatprep.subr.bf16.mxu0 0
        %482 = vmatpush1.bf16.msra.mxu0 0
        %483 = vmatprep.subr.bf16.mxu0 0
        %484 = vmatpush1.bf16.msra.mxu0 0
        %485 = vmatprep.subr.bf16.mxu0 0
        %486 = vmatpush1.bf16.msra.mxu0 0
        %487 = vmatprep.subr.bf16.mxu0 0
        %488 = vmatpush1.bf16.msra.mxu0 %v469
        %489 = vmatprep.subr.bf16.mxu0 0
        %490 = vmatpush1.bf16.msra.mxu0 %v468
        %491 = vmatprep.subr.bf16.mxu0 0
        %492 = vmatpush2.bf16.msra.mxu0 0
        %493 = vmatprep.subr.bf16.mxu0 0
        %494 = vmatpush2.bf16.msra.mxu0 0
        %495 = vmatprep.subr.bf16.mxu0 0
        %496 = vmatpush2.bf16.msra.mxu0 0
        %497 = vmatprep.subr.bf16.mxu0 0
        %498 = vmatpush2.bf16.msra.mxu0 0
        %499 = vmatprep.subr.bf16.mxu0 0
        %500 = vmatpush2.bf16.msra.mxu0 0
        %501 = vmatprep.subr.bf16.mxu0 0
        %502 = vmatpush2.bf16.msra.mxu0 0
        %503 = vmatprep.subr.bf16.mxu0 0
        %504 = vmatpush2.bf16.msra.mxu0 0
        %505 = vmatprep.subr.bf16.mxu0 0
        %506 = vmatpush2.bf16.msra.mxu0 0
        %507 = vmatprep.mubr.bf16.mxu0 0
        %508 = vmatmul.mubr.bf16.gmra.mxu0 %v473
        %v509 = vpop.f32.mrf.mxu0
        %v510 = vadd.f32 0.0, %v509
        %v511 = vpop.f32.mrf.mxu0
        %v512 = vpop.f32.mrf.mxu0
        %v513 = vpop.f32.mrf.mxu0
        %514 = vdwg.mxu0
        %v515 = vld [vmem:[%s6] sm:$0xf]
        %v516 = vld [vmem:[%s6 + $0x4] sm:$0xf]
        %v517 = vld [vmem:[%s6 + $0x8] sm:$0xf]
        %v518 = vld [vmem:[%s6 + $0xc] sm:$0xf]
        %v523 = vunpack.c.l.b16 %v515
        %v524 = vunpack.c.l.b16 %v516
        %v525 = vunpack.c.l.b16 %v517
        %v526 = vunpack.c.l.b16 %v518
        %v527 = vpack.c.b16 %v524, %v523
        %v528 = vpack.c.b16 %v526, %v525
        %v532 = vsel %vm412, %v393, 0
        %534 = vmatprep.subr.bf16.mxu0 0
        %535 = vmatpush1.bf16.msra.mxu0 0
        %536 = vmatprep.subr.bf16.mxu0 0
        %537 = vmatpush1.bf16.msra.mxu0 0
        %538 = vmatprep.subr.bf16.mxu0 0
        %539 = vmatpush1.bf16.msra.mxu0 0
        %540 = vmatprep.subr.bf16.mxu0 0
        %541 = vmatpush1.bf16.msra.mxu0 0
        %542 = vmatprep.subr.bf16.mxu0 0
        %543 = vmatpush1.bf16.msra.mxu0 0
        %544 = vmatprep.subr.bf16.mxu0 0
        %545 = vmatpush1.bf16.msra.mxu0 0
        %546 = vmatprep.subr.bf16.mxu0 0
        %547 = vmatpush1.bf16.msra.mxu0 %v528
        %548 = vmatprep.subr.bf16.mxu0 0
        %549 = vmatpush1.bf16.msra.mxu0 %v527
        %550 = vmatprep.subr.bf16.mxu0 0
        %551 = vmatpush2.bf16.msra.mxu0 0
        %552 = vmatprep.subr.bf16.mxu0 0
        %553 = vmatpush2.bf16.msra.mxu0 0
        %554 = vmatprep.subr.bf16.mxu0 0
        %555 = vmatpush2.bf16.msra.mxu0 0
        %556 = vmatprep.subr.bf16.mxu0 0
        %557 = vmatpush2.bf16.msra.mxu0 0
        %558 = vmatprep.subr.bf16.mxu0 0
        %559 = vmatpush2.bf16.msra.mxu0 0
        %560 = vmatprep.subr.bf16.mxu0 0
        %561 = vmatpush2.bf16.msra.mxu0 0
        %562 = vmatprep.subr.bf16.mxu0 0
        %563 = vmatpush2.bf16.msra.mxu0 0
        %564 = vmatprep.subr.bf16.mxu0 0
        %565 = vmatpush2.bf16.msra.mxu0 0
        %566 = vmatprep.mubr.bf16.mxu0 0
        %567 = vmatmul.mubr.bf16.gmra.mxu0 %v532
        %v568 = vpop.f32.mrf.mxu0
        %v569 = vadd.f32 0.0, %v568
        %v570 = vpop.f32.mrf.mxu0
        %v571 = vpop.f32.mrf.mxu0
        %v572 = vpop.f32.mrf.mxu0
        %573 = vdwg.mxu0
        %v574 = vpack.c.bf16 %v451, %v451
        %v575 = vpack.c.bf16 %v510, %v510
        %vm576 = vcmask 64512
        %v578 = vsel %vm576, %v574, 0
        %v581 = vsel %vm576, %v575, 0
        %583 = vmatprep.subr.bf16.mxu0 0
        %584 = vmatpush1.bf16.xpose.msra.mxu0 0
        %585 = vmatprep.subr.bf16.mxu0 0
        %586 = vmatpush1.bf16.xpose.msra.mxu0 0
        %587 = vmatprep.subr.bf16.mxu0 0
        %588 = vmatpush1.bf16.xpose.msra.mxu0 0
        %589 = vmatprep.subr.bf16.mxu0 0
        %590 = vmatpush1.bf16.xpose.msra.mxu0 0
        %591 = vmatprep.subr.bf16.mxu0 0
        %592 = vmatpush1.bf16.xpose.msra.mxu0 0
        %593 = vmatprep.subr.bf16.mxu0 0
        %594 = vmatpush1.bf16.xpose.msra.mxu0 0
        %595 = vmatprep.subr.bf16.mxu0 0
        %596 = vmatpush1.bf16.xpose.msra.mxu0 0
        %597 = vmatprep.subr.bf16.mxu0 0
        %598 = vmatpush1.bf16.xpose.msra.mxu0 %v581
        %599 = vmatprep.subr.bf16.mxu0 0
        %600 = vmatpush2.bf16.xpose.msra.mxu0 0
        %601 = vmatprep.subr.bf16.mxu0 0
        %602 = vmatpush2.bf16.xpose.msra.mxu0 0
        %603 = vmatprep.subr.bf16.mxu0 0
        %604 = vmatpush2.bf16.xpose.msra.mxu0 0
        %605 = vmatprep.subr.bf16.mxu0 0
        %606 = vmatpush2.bf16.xpose.msra.mxu0 0
        %607 = vmatprep.subr.bf16.mxu0 0
        %608 = vmatpush2.bf16.xpose.msra.mxu0 0
        %609 = vmatprep.subr.bf16.mxu0 0
        %610 = vmatpush2.bf16.xpose.msra.mxu0 0
        %611 = vmatprep.subr.bf16.mxu0 0
        %612 = vmatpush2.bf16.xpose.msra.mxu0 0
        %613 = vmatprep.subr.bf16.mxu0 0
        %614 = vmatpush2.bf16.xpose.msra.mxu0 0
        %615 = vmatprep.mubr.bf16.mxu0 0
        %616 = vmatmul.mubr.bf16.gmra.mxu0 %v578
        %v617 = vpop.f32.mrf.mxu0
        %v618 = vadd.f32 0.0, %v617
        %v619 = vpop.f32.mrf.mxu0
        %v620 = vpop.f32.mrf.mxu0
        %v621 = vpop.f32.mrf.mxu0
        %622 = vdwg.mxu0
        %v623 = vsel %vm395, 16843009, 0
        %v624 = vunpack.c.0.s8 %v623
        %vm625 = vcmp.ne.s32.totalorder %v624, 0
        %v626 = vsel %vm625, -1e+30, %v618
        %v627 = vsel %vm576, %v626, -inf
        %628 = vmax.xlane.f32.xlu0 %v627
        %v629 = vpop.xlane.xlu0 %628
        %v630 = vsub.f32 %v626, %v629
        %v631 = vmul.f32 %v630, 1.442695
        %v632 = vpow.pop %v631
        %v633 = vsel %vm576, %v632, 0.0
        %634 = vadd.xlane.f32.xlu0 %v633
        %v635 = vpop.xlane.xlu0 %634
        %v636 = vrcp.pop %v635
        %v637 = vmul.f32 %v635, %v636
        %v638 = vsub.f32 2.0, %v637
        %v639 = vmul.f32 %v636, %v638
        %v640 = vmul.f32 %v632, %v639
        %v641 = vpack.c.bf16 %v640, %v640
        %v642 = vpack.c.bf16 %v569, %v569
        %v644 = vsel %vm576, %v641, 0
        %vm646 = vcmask 1043456
        %v648 = vsel %vm646, %v642, 0
        %650 = vmatprep.subr.bf16.mxu0 0
        %651 = vmatpush1.bf16.msra.mxu0 0
        %652 = vmatprep.subr.bf16.mxu0 0
        %653 = vmatpush1.bf16.msra.mxu0 0
        %654 = vmatprep.subr.bf16.mxu0 0
        %655 = vmatpush1.bf16.msra.mxu0 0
        %656 = vmatprep.subr.bf16.mxu0 0
        %657 = vmatpush1.bf16.msra.mxu0 0
        %658 = vmatprep.subr.bf16.mxu0 0
        %659 = vmatpush1.bf16.msra.mxu0 0
        %660 = vmatprep.subr.bf16.mxu0 0
        %661 = vmatpush1.bf16.msra.mxu0 0
        %662 = vmatprep.subr.bf16.mxu0 0
        %663 = vmatpush1.bf16.msra.mxu0 0
        %664 = vmatprep.subr.bf16.mxu0 0
        %665 = vmatpush1.bf16.msra.mxu0 %v648
        %666 = vmatprep.subr.bf16.mxu0 0
        %667 = vmatpush2.bf16.msra.mxu0 0
        %668 = vmatprep.subr.bf16.mxu0 0
        %669 = vmatpush2.bf16.msra.mxu0 0
        %670 = vmatprep.subr.bf16.mxu0 0
        %671 = vmatpush2.bf16.msra.mxu0 0
        %672 = vmatprep.subr.bf16.mxu0 0
        %673 = vmatpush2.bf16.msra.mxu0 0
        %674 = vmatprep.subr.bf16.mxu0 0
        %675 = vmatpush2.bf16.msra.mxu0 0
        %676 = vmatprep.subr.bf16.mxu0 0
        %677 = vmatpush2.bf16.msra.mxu0 0
        %678 = vmatprep.subr.bf16.mxu0 0
        %679 = vmatpush2.bf16.msra.mxu0 0
        %680 = vmatprep.subr.bf16.mxu0 0
        %681 = vmatpush2.bf16.msra.mxu0 0
        %682 = vmatprep.mubr.bf16.mxu0 0
        %683 = vmatmul.mubr.bf16.gmra.mxu0 %v644
        %v684 = vpop.f32.mrf.mxu0
        %v685 = vadd.f32 0.0, %v684
        %v686 = vpop.f32.mrf.mxu0
        %v687 = vpop.f32.mrf.mxu0
        %v688 = vpop.f32.mrf.mxu0
        %689 = vdwg.mxu0
        %v690 = vpack.c.bf16 %v685, %v685
        %s691 = scalar_lea.vmem %s4, 16
        %v692 = vld [vmem:[%s691] sm:$0xf]
        %v693 = vld [vmem:[%s691 + $0x4] sm:$0xf]
        %v694 = vld [vmem:[%s691 + $0x8] sm:$0xf]
        %v695 = vld [vmem:[%s691 + $0xc] sm:$0xf]
        %v700 = vunpack.c.l.b16 %v692
        %v701 = vunpack.c.l.b16 %v693
        %v702 = vunpack.c.l.b16 %v694
        %v703 = vunpack.c.l.b16 %v695
        %v704 = vpack.c.b16 %v701, %v700
        %v705 = vpack.c.b16 %v703, %v702
        %708 = vmatprep.subr.bf16.mxu0 0
        %709 = vmatpush1.bf16.msra.mxu0 0
        %710 = vmatprep.subr.bf16.mxu0 0
        %711 = vmatpush1.bf16.msra.mxu0 0
        %712 = vmatprep.subr.bf16.mxu0 0
        %713 = vmatpush1.bf16.msra.mxu0 0
        %714 = vmatprep.subr.bf16.mxu0 0
        %715 = vmatpush1.bf16.msra.mxu0 0
        %716 = vmatprep.subr.bf16.mxu0 0
        %717 = vmatpush1.bf16.msra.mxu0 0
        %718 = vmatprep.subr.bf16.mxu0 0
        %719 = vmatpush1.bf16.msra.mxu0 0
        %720 = vmatprep.subr.bf16.mxu0 0
        %721 = vmatpush1.bf16.msra.mxu0 %v705
        %722 = vmatprep.subr.bf16.mxu0 0
        %723 = vmatpush1.bf16.msra.mxu0 %v704
        %724 = vmatprep.subr.bf16.mxu0 0
        %725 = vmatpush2.bf16.msra.mxu0 0
        %726 = vmatprep.subr.bf16.mxu0 0
        %727 = vmatpush2.bf16.msra.mxu0 0
        %728 = vmatprep.subr.bf16.mxu0 0
        %729 = vmatpush2.bf16.msra.mxu0 0
        %730 = vmatprep.subr.bf16.mxu0 0
        %731 = vmatpush2.bf16.msra.mxu0 0
        %732 = vmatprep.subr.bf16.mxu0 0
        %733 = vmatpush2.bf16.msra.mxu0 0
        %734 = vmatprep.subr.bf16.mxu0 0
        %735 = vmatpush2.bf16.msra.mxu0 0
        %736 = vmatprep.subr.bf16.mxu0 0
        %737 = vmatpush2.bf16.msra.mxu0 0
        %738 = vmatprep.subr.bf16.mxu0 0
        %739 = vmatpush2.bf16.msra.mxu0 0
        %740 = vmatprep.mubr.bf16.mxu0 0
        %741 = vmatmul.mubr.bf16.gmra.mxu0 %v414
        %v742 = vpop.f32.mrf.mxu0
        %v743 = vadd.f32 0.0, %v742
        %v744 = vpop.f32.mrf.mxu0
        %v745 = vpop.f32.mrf.mxu0
        %v746 = vpop.f32.mrf.mxu0
        %747 = vdwg.mxu0
        %s748 = scalar_lea.vmem %s5, 16
        %v749 = vld [vmem:[%s748] sm:$0xf]
        %v750 = vld [vmem:[%s748 + $0x4] sm:$0xf]
        %v751 = vld [vmem:[%s748 + $0x8] sm:$0xf]
        %v752 = vld [vmem:[%s748 + $0xc] sm:$0xf]
        %v757 = vunpack.c.l.b16 %v749
        %v758 = vunpack.c.l.b16 %v750
        %v759 = vunpack.c.l.b16 %v751
        %v760 = vunpack.c.l.b16 %v752
        %v761 = vpack.c.b16 %v758, %v757
        %v762 = vpack.c.b16 %v760, %v759
        %765 = vmatprep.subr.bf16.mxu0 0
        %766 = vmatpush1.bf16.msra.mxu0 0
        %767 = vmatprep.subr.bf16.mxu0 0
        %768 = vmatpush1.bf16.msra.mxu0 0
        %769 = vmatprep.subr.bf16.mxu0 0
        %770 = vmatpush1.bf16.msra.mxu0 0
        %771 = vmatprep.subr.bf16.mxu0 0
        %772 = vmatpush1.bf16.msra.mxu0 0
        %773 = vmatprep.subr.bf16.mxu0 0
        %774 = vmatpush1.bf16.msra.mxu0 0
        %775 = vmatprep.subr.bf16.mxu0 0
        %776 = vmatpush1.bf16.msra.mxu0 0
        %777 = vmatprep.subr.bf16.mxu0 0
        %778 = vmatpush1.bf16.msra.mxu0 %v762
        %779 = vmatprep.subr.bf16.mxu0 0
        %780 = vmatpush1.bf16.msra.mxu0 %v761
        %781 = vmatprep.subr.bf16.mxu0 0
        %782 = vmatpush2.bf16.msra.mxu0 0
        %783 = vmatprep.subr.bf16.mxu0 0
        %784 = vmatpush2.bf16.msra.mxu0 0
        %785 = vmatprep.subr.bf16.mxu0 0
        %786 = vmatpush2.bf16.msra.mxu0 0
        %787 = vmatprep.subr.bf16.mxu0 0
        %788 = vmatpush2.bf16.msra.mxu0 0
        %789 = vmatprep.subr.bf16.mxu0 0
        %790 = vmatpush2.bf16.msra.mxu0 0
        %791 = vmatprep.subr.bf16.mxu0 0
        %792 = vmatpush2.bf16.msra.mxu0 0
        %793 = vmatprep.subr.bf16.mxu0 0
        %794 = vmatpush2.bf16.msra.mxu0 0
        %795 = vmatprep.subr.bf16.mxu0 0
        %796 = vmatpush2.bf16.msra.mxu0 0
        %797 = vmatprep.mubr.bf16.mxu0 0
        %798 = vmatmul.mubr.bf16.gmra.mxu0 %v473
        %v799 = vpop.f32.mrf.mxu0
        %v800 = vadd.f32 0.0, %v799
        %v801 = vpop.f32.mrf.mxu0
        %v802 = vpop.f32.mrf.mxu0
        %v803 = vpop.f32.mrf.mxu0
        %804 = vdwg.mxu0
        %s805 = scalar_lea.vmem %s6, 16
        %v806 = vld [vmem:[%s805] sm:$0xf]
        %v807 = vld [vmem:[%s805 + $0x4] sm:$0xf]
        %v808 = vld [vmem:[%s805 + $0x8] sm:$0xf]
        %v809 = vld [vmem:[%s805 + $0xc] sm:$0xf]
        %v814 = vunpack.c.l.b16 %v806
        %v815 = vunpack.c.l.b16 %v807
        %v816 = vunpack.c.l.b16 %v808
        %v817 = vunpack.c.l.b16 %v809
        %v818 = vpack.c.b16 %v815, %v814
        %v819 = vpack.c.b16 %v817, %v816
        %822 = vmatprep.subr.bf16.mxu0 0
        %823 = vmatpush1.bf16.msra.mxu0 0
        %824 = vmatprep.subr.bf16.mxu0 0
        %825 = vmatpush1.bf16.msra.mxu0 0
        %826 = vmatprep.subr.bf16.mxu0 0
        %827 = vmatpush1.bf16.msra.mxu0 0
        %828 = vmatprep.subr.bf16.mxu0 0
        %829 = vmatpush1.bf16.msra.mxu0 0
        %830 = vmatprep.subr.bf16.mxu0 0
        %831 = vmatpush1.bf16.msra.mxu0 0
        %832 = vmatprep.subr.bf16.mxu0 0
        %833 = vmatpush1.bf16.msra.mxu0 0
        %834 = vmatprep.subr.bf16.mxu0 0
        %835 = vmatpush1.bf16.msra.mxu0 %v819
        %836 = vmatprep.subr.bf16.mxu0 0
        %837 = vmatpush1.bf16.msra.mxu0 %v818
        %838 = vmatprep.subr.bf16.mxu0 0
        %839 = vmatpush2.bf16.msra.mxu0 0
        %840 = vmatprep.subr.bf16.mxu0 0
        %841 = vmatpush2.bf16.msra.mxu0 0
        %842 = vmatprep.subr.bf16.mxu0 0
        %843 = vmatpush2.bf16.msra.mxu0 0
        %844 = vmatprep.subr.bf16.mxu0 0
        %845 = vmatpush2.bf16.msra.mxu0 0
        %846 = vmatprep.subr.bf16.mxu0 0
        %847 = vmatpush2.bf16.msra.mxu0 0
        %848 = vmatprep.subr.bf16.mxu0 0
        %849 = vmatpush2.bf16.msra.mxu0 0
        %850 = vmatprep.subr.bf16.mxu0 0
        %851 = vmatpush2.bf16.msra.mxu0 0
        %852 = vmatprep.subr.bf16.mxu0 0
        %853 = vmatpush2.bf16.msra.mxu0 0
        %854 = vmatprep.mubr.bf16.mxu0 0
        %855 = vmatmul.mubr.bf16.gmra.mxu0 %v532
        %v856 = vpop.f32.mrf.mxu0
        %v857 = vadd.f32 0.0, %v856
        %v858 = vpop.f32.mrf.mxu0
        %v859 = vpop.f32.mrf.mxu0
        %v860 = vpop.f32.mrf.mxu0
        %861 = vdwg.mxu0
        %v862 = vpack.c.bf16 %v743, %v743
        %v863 = vpack.c.bf16 %v800, %v800
        %v865 = vsel %vm576, %v862, 0
        %v868 = vsel %vm576, %v863, 0
        %870 = vmatprep.subr.bf16.mxu0 0
        %871 = vmatpush1.bf16.xpose.msra.mxu0 0
        %872 = vmatprep.subr.bf16.mxu0 0
        %873 = vmatpush1.bf16.xpose.msra.mxu0 0
        %874 = vmatprep.subr.bf16.mxu0 0
        %875 = vmatpush1.bf16.xpose.msra.mxu0 0
        %876 = vmatprep.subr.bf16.mxu0 0
        %877 = vmatpush1.bf16.xpose.msra.mxu0 0
        %878 = vmatprep.subr.bf16.mxu0 0
        %879 = vmatpush1.bf16.xpose.msra.mxu0 0
        %880 = vmatprep.subr.bf16.mxu0 0
        %881 = vmatpush1.bf16.xpose.msra.mxu0 0
        %882 = vmatprep.subr.bf16.mxu0 0
        %883 = vmatpush1.bf16.xpose.msra.mxu0 0
        %884 = vmatprep.subr.bf16.mxu0 0
        %885 = vmatpush1.bf16.xpose.msra.mxu0 %v868
        %886 = vmatprep.subr.bf16.mxu0 0
        %887 = vmatpush2.bf16.xpose.msra.mxu0 0
        %888 = vmatprep.subr.bf16.mxu0 0
        %889 = vmatpush2.bf16.xpose.msra.mxu0 0
        %890 = vmatprep.subr.bf16.mxu0 0
        %891 = vmatpush2.bf16.xpose.msra.mxu0 0
        %892 = vmatprep.subr.bf16.mxu0 0
        %893 = vmatpush2.bf16.xpose.msra.mxu0 0
        %894 = vmatprep.subr.bf16.mxu0 0
        %895 = vmatpush2.bf16.xpose.msra.mxu0 0
        %896 = vmatprep.subr.bf16.mxu0 0
        %897 = vmatpush2.bf16.xpose.msra.mxu0 0
        %898 = vmatprep.subr.bf16.mxu0 0
        %899 = vmatpush2.bf16.xpose.msra.mxu0 0
        %900 = vmatprep.subr.bf16.mxu0 0
        %901 = vmatpush2.bf16.xpose.msra.mxu0 0
        %902 = vmatprep.mubr.bf16.mxu0 0
        %903 = vmatmul.mubr.bf16.gmra.mxu0 %v865
        %v904 = vpop.f32.mrf.mxu0
        %v905 = vadd.f32 0.0, %v904
        %v906 = vpop.f32.mrf.mxu0
        %v907 = vpop.f32.mrf.mxu0
        %v908 = vpop.f32.mrf.mxu0
        %909 = vdwg.mxu0
        %v910 = vsel %vm625, -1e+30, %v905
        %v911 = vsel %vm576, %v910, -inf
        %912 = vmax.xlane.f32.xlu0 %v911
        %v913 = vpop.xlane.xlu0 %912
        %v914 = vsub.f32 %v910, %v913
        %v915 = vmul.f32 %v914, 1.442695
        %v916 = vpow.pop %v915
        %v917 = vsel %vm576, %v916, 0.0
        %918 = vadd.xlane.f32.xlu0 %v917
        %v919 = vpop.xlane.xlu0 %918
        %v920 = vrcp.pop %v919
        %v921 = vmul.f32 %v919, %v920
        %v922 = vsub.f32 2.0, %v921
        %v923 = vmul.f32 %v920, %v922
        %v924 = vmul.f32 %v916, %v923
        %v925 = vpack.c.bf16 %v924, %v924
        %v926 = vpack.c.bf16 %v857, %v857
        %v928 = vsel %vm576, %v925, 0
        %v931 = vsel %vm646, %v926, 0
        %933 = vmatprep.subr.bf16.mxu0 0
        %934 = vmatpush1.bf16.msra.mxu0 0
        %935 = vmatprep.subr.bf16.mxu0 0
        %936 = vmatpush1.bf16.msra.mxu0 0
        %937 = vmatprep.subr.bf16.mxu0 0
        %938 = vmatpush1.bf16.msra.mxu0 0
        %939 = vmatprep.subr.bf16.mxu0 0
        %940 = vmatpush1.bf16.msra.mxu0 0
        %941 = vmatprep.subr.bf16.mxu0 0
        %942 = vmatpush1.bf16.msra.mxu0 0
        %943 = vmatprep.subr.bf16.mxu0 0
        %944 = vmatpush1.bf16.msra.mxu0 0
        %945 = vmatprep.subr.bf16.mxu0 0
        %946 = vmatpush1.bf16.msra.mxu0 0
        %947 = vmatprep.subr.bf16.mxu0 0
        %948 = vmatpush1.bf16.msra.mxu0 %v931
        %949 = vmatprep.subr.bf16.mxu0 0
        %950 = vmatpush2.bf16.msra.mxu0 0
        %951 = vmatprep.subr.bf16.mxu0 0
        %952 = vmatpush2.bf16.msra.mxu0 0
        %953 = vmatprep.subr.bf16.mxu0 0
        %954 = vmatpush2.bf16.msra.mxu0 0
        %955 = vmatprep.subr.bf16.mxu0 0
        %956 = vmatpush2.bf16.msra.mxu0 0
        %957 = vmatprep.subr.bf16.mxu0 0
        %958 = vmatpush2.bf16.msra.mxu0 0
        %959 = vmatprep.subr.bf16.mxu0 0
        %960 = vmatpush2.bf16.msra.mxu0 0
        %961 = vmatprep.subr.bf16.mxu0 0
        %962 = vmatpush2.bf16.msra.mxu0 0
        %963 = vmatprep.subr.bf16.mxu0 0
        %964 = vmatpush2.bf16.msra.mxu0 0
        %965 = vmatprep.mubr.bf16.mxu0 0
        %966 = vmatmul.mubr.bf16.gmra.mxu0 %v928
        %v967 = vpop.f32.mrf.mxu0
        %v968 = vadd.f32 0.0, %v967
        %v969 = vpop.f32.mrf.mxu0
        %v970 = vpop.f32.mrf.mxu0
        %v971 = vpop.f32.mrf.mxu0
        %972 = vdwg.mxu0
        %v973 = vpack.c.bf16 %v968, %v968
        %s974 = scalar_lea.vmem %s4, 32
        %v975 = vld [vmem:[%s974] sm:$0xf]
        %v976 = vld [vmem:[%s974 + $0x4] sm:$0xf]
        %v977 = vld [vmem:[%s974 + $0x8] sm:$0xf]
        %v978 = vld [vmem:[%s974 + $0xc] sm:$0xf]
        %v983 = vunpack.c.l.b16 %v975
        %v984 = vunpack.c.l.b16 %v976
        %v985 = vunpack.c.l.b16 %v977
        %v986 = vunpack.c.l.b16 %v978
        %v987 = vpack.c.b16 %v984, %v983
        %v988 = vpack.c.b16 %v986, %v985
        %991 = vmatprep.subr.bf16.mxu0 0
        %992 = vmatpush1.bf16.msra.mxu0 0
        %993 = vmatprep.subr.bf16.mxu0 0
        %994 = vmatpush1.bf16.msra.mxu0 0
        %995 = vmatprep.subr.bf16.mxu0 0
        %996 = vmatpush1.bf16.msra.mxu0 0
        %997 = vmatprep.subr.bf16.mxu0 0
        %998 = vmatpush1.bf16.msra.mxu0 0
        %999 = vmatprep.subr.bf16.mxu0 0
        %1000 = vmatpush1.bf16.msra.mxu0 0
        %1001 = vmatprep.subr.bf16.mxu0 0
        %1002 = vmatpush1.bf16.msra.mxu0 0
        %1003 = vmatprep.subr.bf16.mxu0 0
        %1004 = vmatpush1.bf16.msra.mxu0 %v988
        %1005 = vmatprep.subr.bf16.mxu0 0
        %1006 = vmatpush1.bf16.msra.mxu0 %v987
        %1007 = vmatprep.subr.bf16.mxu0 0
        %1008 = vmatpush2.bf16.msra.mxu0 0
        %1009 = vmatprep.subr.bf16.mxu0 0
        %1010 = vmatpush2.bf16.msra.mxu0 0
        %1011 = vmatprep.subr.bf16.mxu0 0
        %1012 = vmatpush2.bf16.msra.mxu0 0
        %1013 = vmatprep.subr.bf16.mxu0 0
        %1014 = vmatpush2.bf16.msra.mxu0 0
        %1015 = vmatprep.subr.bf16.mxu0 0
        %1016 = vmatpush2.bf16.msra.mxu0 0
        %1017 = vmatprep.subr.bf16.mxu0 0
        %1018 = vmatpush2.bf16.msra.mxu0 0
        %1019 = vmatprep.subr.bf16.mxu0 0
        %1020 = vmatpush2.bf16.msra.mxu0 0
        %1021 = vmatprep.subr.bf16.mxu0 0
        %1022 = vmatpush2.bf16.msra.mxu0 0
        %1023 = vmatprep.mubr.bf16.mxu0 0
        %1024 = vmatmul.mubr.bf16.gmra.mxu0 %v414
        %v1025 = vpop.f32.mrf.mxu0
        %v1026 = vadd.f32 0.0, %v1025
        %v1027 = vpop.f32.mrf.mxu0
        %v1028 = vpop.f32.mrf.mxu0
        %v1029 = vpop.f32.mrf.mxu0
        %1030 = vdwg.mxu0
        %s1031 = scalar_lea.vmem %s5, 32
        %v1032 = vld [vmem:[%s1031] sm:$0xf]
        %v1033 = vld [vmem:[%s1031 + $0x4] sm:$0xf]
        %v1034 = vld [vmem:[%s1031 + $0x8] sm:$0xf]
        %v1035 = vld [vmem:[%s1031 + $0xc] sm:$0xf]
        %v1040 = vunpack.c.l.b16 %v1032
        %v1041 = vunpack.c.l.b16 %v1033
        %v1042 = vunpack.c.l.b16 %v1034
        %v1043 = vunpack.c.l.b16 %v1035
        %v1044 = vpack.c.b16 %v1041, %v1040
        %v1045 = vpack.c.b16 %v1043, %v1042
        %1048 = vmatprep.subr.bf16.mxu0 0
        %1049 = vmatpush1.bf16.msra.mxu0 0
        %1050 = vmatprep.subr.bf16.mxu0 0
        %1051 = vmatpush1.bf16.msra.mxu0 0
        %1052 = vmatprep.subr.bf16.mxu0 0
        %1053 = vmatpush1.bf16.msra.mxu0 0
        %1054 = vmatprep.subr.bf16.mxu0 0
        %1055 = vmatpush1.bf16.msra.mxu0 0
        %1056 = vmatprep.subr.bf16.mxu0 0
        %1057 = vmatpush1.bf16.msra.mxu0 0
        %1058 = vmatprep.subr.bf16.mxu0 0
        %1059 = vmatpush1.bf16.msra.mxu0 0
        %1060 = vmatprep.subr.bf16.mxu0 0
        %1061 = vmatpush1.bf16.msra.mxu0 %v1045
        %1062 = vmatprep.subr.bf16.mxu0 0
        %1063 = vmatpush1.bf16.msra.mxu0 %v1044
        %1064 = vmatprep.subr.bf16.mxu0 0
        %1065 = vmatpush2.bf16.msra.mxu0 0
        %1066 = vmatprep.subr.bf16.mxu0 0
        %1067 = vmatpush2.bf16.msra.mxu0 0
        %1068 = vmatprep.subr.bf16.mxu0 0
        %1069 = vmatpush2.bf16.msra.mxu0 0
        %1070 = vmatprep.subr.bf16.mxu0 0
        %1071 = vmatpush2.bf16.msra.mxu0 0
        %1072 = vmatprep.subr.bf16.mxu0 0
        %1073 = vmatpush2.bf16.msra.mxu0 0
        %1074 = vmatprep.subr.bf16.mxu0 0
        %1075 = vmatpush2.bf16.msra.mxu0 0
        %1076 = vmatprep.subr.bf16.mxu0 0
        %1077 = vmatpush2.bf16.msra.mxu0 0
        %1078 = vmatprep.subr.bf16.mxu0 0
        %1079 = vmatpush2.bf16.msra.mxu0 0
        %1080 = vmatprep.mubr.bf16.mxu0 0
        %1081 = vmatmul.mubr.bf16.gmra.mxu0 %v473
        %v1082 = vpop.f32.mrf.mxu0
        %v1083 = vadd.f32 0.0, %v1082
        %v1084 = vpop.f32.mrf.mxu0
        %v1085 = vpop.f32.mrf.mxu0
        %v1086 = vpop.f32.mrf.mxu0
        %1087 = vdwg.mxu0
        %s1088 = scalar_lea.vmem %s6, 32
        %v1089 = vld [vmem:[%s1088] sm:$0xf]
        %v1090 = vld [vmem:[%s1088 + $0x4] sm:$0xf]
        %v1091 = vld [vmem:[%s1088 + $0x8] sm:$0xf]
        %v1092 = vld [vmem:[%s1088 + $0xc] sm:$0xf]
        %v1097 = vunpack.c.l.b16 %v1089
        %v1098 = vunpack.c.l.b16 %v1090
        %v1099 = vunpack.c.l.b16 %v1091
        %v1100 = vunpack.c.l.b16 %v1092
        %v1101 = vpack.c.b16 %v1098, %v1097
        %v1102 = vpack.c.b16 %v1100, %v1099
        %1105 = vmatprep.subr.bf16.mxu0 0
        %1106 = vmatpush1.bf16.msra.mxu0 0
        %1107 = vmatprep.subr.bf16.mxu0 0
        %1108 = vmatpush1.bf16.msra.mxu0 0
        %1109 = vmatprep.subr.bf16.mxu0 0
        %1110 = vmatpush1.bf16.msra.mxu0 0
        %1111 = vmatprep.subr.bf16.mxu0 0
        %1112 = vmatpush1.bf16.msra.mxu0 0
        %1113 = vmatprep.subr.bf16.mxu0 0
        %1114 = vmatpush1.bf16.msra.mxu0 0
        %1115 = vmatprep.subr.bf16.mxu0 0
        %1116 = vmatpush1.bf16.msra.mxu0 0
        %1117 = vmatprep.subr.bf16.mxu0 0
        %1118 = vmatpush1.bf16.msra.mxu0 %v1102
        %1119 = vmatprep.subr.bf16.mxu0 0
        %1120 = vmatpush1.bf16.msra.mxu0 %v1101
        %1121 = vmatprep.subr.bf16.mxu0 0
        %1122 = vmatpush2.bf16.msra.mxu0 0
        %1123 = vmatprep.subr.bf16.mxu0 0
        %1124 = vmatpush2.bf16.msra.mxu0 0
        %1125 = vmatprep.subr.bf16.mxu0 0
        %1126 = vmatpush2.bf16.msra.mxu0 0
        %1127 = vmatprep.subr.bf16.mxu0 0
        %1128 = vmatpush2.bf16.msra.mxu0 0
        %1129 = vmatprep.subr.bf16.mxu0 0
        %1130 = vmatpush2.bf16.msra.mxu0 0
        %1131 = vmatprep.subr.bf16.mxu0 0
        %1132 = vmatpush2.bf16.msra.mxu0 0
        %1133 = vmatprep.subr.bf16.mxu0 0
        %1134 = vmatpush2.bf16.msra.mxu0 0
        %1135 = vmatprep.subr.bf16.mxu0 0
        %1136 = vmatpush2.bf16.msra.mxu0 0
        %1137 = vmatprep.mubr.bf16.mxu0 0
        %1138 = vmatmul.mubr.bf16.gmra.mxu0 %v532
        %v1139 = vpop.f32.mrf.mxu0
        %v1140 = vadd.f32 0.0, %v1139
        %v1141 = vpop.f32.mrf.mxu0
        %v1142 = vpop.f32.mrf.mxu0
        %v1143 = vpop.f32.mrf.mxu0
        %1144 = vdwg.mxu0
        %v1145 = vpack.c.bf16 %v1026, %v1026
        %v1146 = vpack.c.bf16 %v1083, %v1083
        %v1148 = vsel %vm576, %v1145, 0
        %v1151 = vsel %vm576, %v1146, 0
        %1153 = vmatprep.subr.bf16.mxu0 0
        %1154 = vmatpush1.bf16.xpose.msra.mxu0 0
        %1155 = vmatprep.subr.bf16.mxu0 0
        %1156 = vmatpush1.bf16.xpose.msra.mxu0 0
        %1157 = vmatprep.subr.bf16.mxu0 0
        %1158 = vmatpush1.bf16.xpose.msra.mxu0 0
        %1159 = vmatprep.subr.bf16.mxu0 0
        %1160 = vmatpush1.bf16.xpose.msra.mxu0 0
        %1161 = vmatprep.subr.bf16.mxu0 0
        %1162 = vmatpush1.bf16.xpose.msra.mxu0 0
        %1163 = vmatprep.subr.bf16.mxu0 0
        %1164 = vmatpush1.bf16.xpose.msra.mxu0 0
        %1165 = vmatprep.subr.bf16.mxu0 0
        %1166 = vmatpush1.bf16.xpose.msra.mxu0 0
        %1167 = vmatprep.subr.bf16.mxu0 0
        %1168 = vmatpush1.bf16.xpose.msra.mxu0 %v1151
        %1169 = vmatprep.subr.bf16.mxu0 0
        %1170 = vmatpush2.bf16.xpose.msra.mxu0 0
        %1171 = vmatprep.subr.bf16.mxu0 0
        %1172 = vmatpush2.bf16.xpose.msra.mxu0 0
        %1173 = vmatprep.subr.bf16.mxu0 0
        %1174 = vmatpush2.bf16.xpose.msra.mxu0 0
        %1175 = vmatprep.subr.bf16.mxu0 0
        %1176 = vmatpush2.bf16.xpose.msra.mxu0 0
        %1177 = vmatprep.subr.bf16.mxu0 0
        %1178 = vmatpush2.bf16.xpose.msra.mxu0 0
        %1179 = vmatprep.subr.bf16.mxu0 0
        %1180 = vmatpush2.bf16.xpose.msra.mxu0 0
        %1181 = vmatprep.subr.bf16.mxu0 0
        %1182 = vmatpush2.bf16.xpose.msra.mxu0 0
        %1183 = vmatprep.subr.bf16.mxu0 0
        %1184 = vmatpush2.bf16.xpose.msra.mxu0 0
        %1185 = vmatprep.mubr.bf16.mxu0 0
        %1186 = vmatmul.mubr.bf16.gmra.mxu0 %v1148
        %v1187 = vpop.f32.mrf.mxu0
        %v1188 = vadd.f32 0.0, %v1187
        %v1189 = vpop.f32.mrf.mxu0
        %v1190 = vpop.f32.mrf.mxu0
        %v1191 = vpop.f32.mrf.mxu0
        %1192 = vdwg.mxu0
        %v1193 = vsel %vm625, -1e+30, %v1188
        %v1194 = vsel %vm576, %v1193, -inf
        %1195 = vmax.xlane.f32.xlu0 %v1194
        %v1196 = vpop.xlane.xlu0 %1195
        %v1197 = vsub.f32 %v1193, %v1196
        %v1198 = vmul.f32 %v1197, 1.442695
        %v1199 = vpow.pop %v1198
        %v1200 = vsel %vm576, %v1199, 0.0
        %1201 = vadd.xlane.f32.xlu0 %v1200
        %v1202 = vpop.xlane.xlu0 %1201
        %v1203 = vrcp.pop %v1202
        %v1204 = vmul.f32 %v1202, %v1203
        %v1205 = vsub.f32 2.0, %v1204
        %v1206 = vmul.f32 %v1203, %v1205
        %v1207 = vmul.f32 %v1199, %v1206
        %v1208 = vpack.c.bf16 %v1207, %v1207
        %v1209 = vpack.c.bf16 %v1140, %v1140
        %v1211 = vsel %vm576, %v1208, 0
        %v1214 = vsel %vm646, %v1209, 0
        %1216 = vmatprep.subr.bf16.mxu0 0
        %1217 = vmatpush1.bf16.msra.mxu0 0
        %1218 = vmatprep.subr.bf16.mxu0 0
        %1219 = vmatpush1.bf16.msra.mxu0 0
        %1220 = vmatprep.subr.bf16.mxu0 0
        %1221 = vmatpush1.bf16.msra.mxu0 0
        %1222 = vmatprep.subr.bf16.mxu0 0
        %1223 = vmatpush1.bf16.msra.mxu0 0
        %1224 = vmatprep.subr.bf16.mxu0 0
        %1225 = vmatpush1.bf16.msra.mxu0 0
        %1226 = vmatprep.subr.bf16.mxu0 0
        %1227 = vmatpush1.bf16.msra.mxu0 0
        %1228 = vmatprep.subr.bf16.mxu0 0
        %1229 = vmatpush1.bf16.msra.mxu0 0
        %1230 = vmatprep.subr.bf16.mxu0 0
        %1231 = vmatpush1.bf16.msra.mxu0 %v1214
        %1232 = vmatprep.subr.bf16.mxu0 0
        %1233 = vmatpush2.bf16.msra.mxu0 0
        %1234 = vmatprep.subr.bf16.mxu0 0
        %1235 = vmatpush2.bf16.msra.mxu0 0
        %1236 = vmatprep.subr.bf16.mxu0 0
        %1237 = vmatpush2.bf16.msra.mxu0 0
        %1238 = vmatprep.subr.bf16.mxu0 0
        %1239 = vmatpush2.bf16.msra.mxu0 0
        %1240 = vmatprep.subr.bf16.mxu0 0
        %1241 = vmatpush2.bf16.msra.mxu0 0
        %1242 = vmatprep.subr.bf16.mxu0 0
        %1243 = vmatpush2.bf16.msra.mxu0 0
        %1244 = vmatprep.subr.bf16.mxu0 0
        %1245 = vmatpush2.bf16.msra.mxu0 0
        %1246 = vmatprep.subr.bf16.mxu0 0
        %1247 = vmatpush2.bf16.msra.mxu0 0
        %1248 = vmatprep.mubr.bf16.mxu0 0
        %1249 = vmatmul.mubr.bf16.gmra.mxu0 %v1211
        %v1250 = vpop.f32.mrf.mxu0
        %v1251 = vadd.f32 0.0, %v1250
        %v1252 = vpop.f32.mrf.mxu0
        %v1253 = vpop.f32.mrf.mxu0
        %v1254 = vpop.f32.mrf.mxu0
        %1255 = vdwg.mxu0
        %v1256 = vpack.c.bf16 %v1251, %v1251
        %s1257 = scalar_lea.vmem %s4, 48
        %v1258 = vld [vmem:[%s1257] sm:$0xf]
        %v1259 = vld [vmem:[%s1257 + $0x4] sm:$0xf]
        %v1260 = vld [vmem:[%s1257 + $0x8] sm:$0xf]
        %v1261 = vld [vmem:[%s1257 + $0xc] sm:$0xf]
        %v1266 = vunpack.c.l.b16 %v1258
        %v1267 = vunpack.c.l.b16 %v1259
        %v1268 = vunpack.c.l.b16 %v1260
        %v1269 = vunpack.c.l.b16 %v1261
        %v1270 = vpack.c.b16 %v1267, %v1266
        %v1271 = vpack.c.b16 %v1269, %v1268
        %1274 = vmatprep.subr.bf16.mxu0 0
        %1275 = vmatpush1.bf16.msra.mxu0 0
        %1276 = vmatprep.subr.bf16.mxu0 0
        %1277 = vmatpush1.bf16.msra.mxu0 0
        %1278 = vmatprep.subr.bf16.mxu0 0
        %1279 = vmatpush1.bf16.msra.mxu0 0
        %1280 = vmatprep.subr.bf16.mxu0 0
        %1281 = vmatpush1.bf16.msra.mxu0 0
        %1282 = vmatprep.subr.bf16.mxu0 0
        %1283 = vmatpush1.bf16.msra.mxu0 0
        %1284 = vmatprep.subr.bf16.mxu0 0
        %1285 = vmatpush1.bf16.msra.mxu0 0
        %1286 = vmatprep.subr.bf16.mxu0 0
        %1287 = vmatpush1.bf16.msra.mxu0 %v1271
        %1288 = vmatprep.subr.bf16.mxu0 0
        %1289 = vmatpush1.bf16.msra.mxu0 %v1270
        %1290 = vmatprep.subr.bf16.mxu0 0
        %1291 = vmatpush2.bf16.msra.mxu0 0
        %1292 = vmatprep.subr.bf16.mxu0 0
        %1293 = vmatpush2.bf16.msra.mxu0 0
        %1294 = vmatprep.subr.bf16.mxu0 0
        %1295 = vmatpush2.bf16.msra.mxu0 0
        %1296 = vmatprep.subr.bf16.mxu0 0
        %1297 = vmatpush2.bf16.msra.mxu0 0
        %1298 = vmatprep.subr.bf16.mxu0 0
        %1299 = vmatpush2.bf16.msra.mxu0 0
        %1300 = vmatprep.subr.bf16.mxu0 0
        %1301 = vmatpush2.bf16.msra.mxu0 0
        %1302 = vmatprep.subr.bf16.mxu0 0
        %1303 = vmatpush2.bf16.msra.mxu0 0
        %1304 = vmatprep.subr.bf16.mxu0 0
        %1305 = vmatpush2.bf16.msra.mxu0 0
        %1306 = vmatprep.mubr.bf16.mxu0 0
        %1307 = vmatmul.mubr.bf16.gmra.mxu0 %v414
        %v1308 = vpop.f32.mrf.mxu0
        %v1309 = vadd.f32 0.0, %v1308
        %v1310 = vpop.f32.mrf.mxu0
        %v1311 = vpop.f32.mrf.mxu0
        %v1312 = vpop.f32.mrf.mxu0
        %1313 = vdwg.mxu0
        %s1314 = scalar_lea.vmem %s5, 48
        %v1315 = vld [vmem:[%s1314] sm:$0xf]
        %v1316 = vld [vmem:[%s1314 + $0x4] sm:$0xf]
        %v1317 = vld [vmem:[%s1314 + $0x8] sm:$0xf]
        %v1318 = vld [vmem:[%s1314 + $0xc] sm:$0xf]
        %v1323 = vunpack.c.l.b16 %v1315
        %v1324 = vunpack.c.l.b16 %v1316
        %v1325 = vunpack.c.l.b16 %v1317
        %v1326 = vunpack.c.l.b16 %v1318
        %v1327 = vpack.c.b16 %v1324, %v1323
        %v1328 = vpack.c.b16 %v1326, %v1325
        %1331 = vmatprep.subr.bf16.mxu0 0
        %1332 = vmatpush1.bf16.msra.mxu0 0
        %1333 = vmatprep.subr.bf16.mxu0 0
        %1334 = vmatpush1.bf16.msra.mxu0 0
        %1335 = vmatprep.subr.bf16.mxu0 0
        %1336 = vmatpush1.bf16.msra.mxu0 0
        %1337 = vmatprep.subr.bf16.mxu0 0
        %1338 = vmatpush1.bf16.msra.mxu0 0
        %1339 = vmatprep.subr.bf16.mxu0 0
        %1340 = vmatpush1.bf16.msra.mxu0 0
        %1341 = vmatprep.subr.bf16.mxu0 0
        %1342 = vmatpush1.bf16.msra.mxu0 0
        %1343 = vmatprep.subr.bf16.mxu0 0
        %1344 = vmatpush1.bf16.msra.mxu0 %v1328
        %1345 = vmatprep.subr.bf16.mxu0 0
        %1346 = vmatpush1.bf16.msra.mxu0 %v1327
        %1347 = vmatprep.subr.bf16.mxu0 0
        %1348 = vmatpush2.bf16.msra.mxu0 0
        %1349 = vmatprep.subr.bf16.mxu0 0
        %1350 = vmatpush2.bf16.msra.mxu0 0
        %1351 = vmatprep.subr.bf16.mxu0 0
        %1352 = vmatpush2.bf16.msra.mxu0 0
        %1353 = vmatprep.subr.bf16.mxu0 0
        %1354 = vmatpush2.bf16.msra.mxu0 0
        %1355 = vmatprep.subr.bf16.mxu0 0
        %1356 = vmatpush2.bf16.msra.mxu0 0
        %1357 = vmatprep.subr.bf16.mxu0 0
        %1358 = vmatpush2.bf16.msra.mxu0 0
        %1359 = vmatprep.subr.bf16.mxu0 0
        %1360 = vmatpush2.bf16.msra.mxu0 0
        %1361 = vmatprep.subr.bf16.mxu0 0
        %1362 = vmatpush2.bf16.msra.mxu0 0
        %1363 = vmatprep.mubr.bf16.mxu0 0
        %1364 = vmatmul.mubr.bf16.gmra.mxu0 %v473
        %v1365 = vpop.f32.mrf.mxu0
        %v1366 = vadd.f32 0.0, %v1365
        %v1367 = vpop.f32.mrf.mxu0
        %v1368 = vpop.f32.mrf.mxu0
        %v1369 = vpop.f32.mrf.mxu0
        %1370 = vdwg.mxu0
        %s1371 = scalar_lea.vmem %s6, 48
        %v1372 = vld [vmem:[%s1371] sm:$0xf]
        %v1373 = vld [vmem:[%s1371 + $0x4] sm:$0xf]
        %v1374 = vld [vmem:[%s1371 + $0x8] sm:$0xf]
        %v1375 = vld [vmem:[%s1371 + $0xc] sm:$0xf]
        %v1380 = vunpack.c.l.b16 %v1372
        %v1381 = vunpack.c.l.b16 %v1373
        %v1382 = vunpack.c.l.b16 %v1374
        %v1383 = vunpack.c.l.b16 %v1375
        %v1384 = vpack.c.b16 %v1381, %v1380
        %v1385 = vpack.c.b16 %v1383, %v1382
        %1388 = vmatprep.subr.bf16.mxu0 0
        %1389 = vmatpush1.bf16.msra.mxu0 0
        %1390 = vmatprep.subr.bf16.mxu0 0
        %1391 = vmatpush1.bf16.msra.mxu0 0
        %1392 = vmatprep.subr.bf16.mxu0 0
        %1393 = vmatpush1.bf16.msra.mxu0 0
        %1394 = vmatprep.subr.bf16.mxu0 0
        %1395 = vmatpush1.bf16.msra.mxu0 0
        %1396 = vmatprep.subr.bf16.mxu0 0
        %1397 = vmatpush1.bf16.msra.mxu0 0
        %1398 = vmatprep.subr.bf16.mxu0 0
        %1399 = vmatpush1.bf16.msra.mxu0 0
        %1400 = vmatprep.subr.bf16.mxu0 0
        %1401 = vmatpush1.bf16.msra.mxu0 %v1385
        %1402 = vmatprep.subr.bf16.mxu0 0
        %1403 = vmatpush1.bf16.msra.mxu0 %v1384
        %1404 = vmatprep.subr.bf16.mxu0 0
        %1405 = vmatpush2.bf16.msra.mxu0 0
        %1406 = vmatprep.subr.bf16.mxu0 0
        %1407 = vmatpush2.bf16.msra.mxu0 0
        %1408 = vmatprep.subr.bf16.mxu0 0
        %1409 = vmatpush2.bf16.msra.mxu0 0
        %1410 = vmatprep.subr.bf16.mxu0 0
        %1411 = vmatpush2.bf16.msra.mxu0 0
        %1412 = vmatprep.subr.bf16.mxu0 0
        %1413 = vmatpush2.bf16.msra.mxu0 0
        %1414 = vmatprep.subr.bf16.mxu0 0
        %1415 = vmatpush2.bf16.msra.mxu0 0
        %1416 = vmatprep.subr.bf16.mxu0 0
        %1417 = vmatpush2.bf16.msra.mxu0 0
        %1418 = vmatprep.subr.bf16.mxu0 0
        %1419 = vmatpush2.bf16.msra.mxu0 0
        %1420 = vmatprep.mubr.bf16.mxu0 0
        %1421 = vmatmul.mubr.bf16.gmra.mxu0 %v532
        %v1422 = vpop.f32.mrf.mxu0
        %v1423 = vadd.f32 0.0, %v1422
        %v1424 = vpop.f32.mrf.mxu0
        %v1425 = vpop.f32.mrf.mxu0
        %v1426 = vpop.f32.mrf.mxu0
        %1427 = vdwg.mxu0
        %v1428 = vpack.c.bf16 %v1309, %v1309
        %v1429 = vpack.c.bf16 %v1366, %v1366
        %v1431 = vsel %vm576, %v1428, 0
        %v1434 = vsel %vm576, %v1429, 0
        %1436 = vmatprep.subr.bf16.mxu0 0
        %1437 = vmatpush1.bf16.xpose.msra.mxu0 0
        %1438 = vmatprep.subr.bf16.mxu0 0
        %1439 = vmatpush1.bf16.xpose.msra.mxu0 0
        %1440 = vmatprep.subr.bf16.mxu0 0
        %1441 = vmatpush1.bf16.xpose.msra.mxu0 0
        %1442 = vmatprep.subr.bf16.mxu0 0
        %1443 = vmatpush1.bf16.xpose.msra.mxu0 0
        %1444 = vmatprep.subr.bf16.mxu0 0
        %1445 = vmatpush1.bf16.xpose.msra.mxu0 0
        %1446 = vmatprep.subr.bf16.mxu0 0
        %1447 = vmatpush1.bf16.xpose.msra.mxu0 0
        %1448 = vmatprep.subr.bf16.mxu0 0
        %1449 = vmatpush1.bf16.xpose.msra.mxu0 0
        %1450 = vmatprep.subr.bf16.mxu0 0
        %1451 = vmatpush1.bf16.xpose.msra.mxu0 %v1434
        %1452 = vmatprep.subr.bf16.mxu0 0
        %1453 = vmatpush2.bf16.xpose.msra.mxu0 0
        %1454 = vmatprep.subr.bf16.mxu0 0
        %1455 = vmatpush2.bf16.xpose.msra.mxu0 0
        %1456 = vmatprep.subr.bf16.mxu0 0
        %1457 = vmatpush2.bf16.xpose.msra.mxu0 0
        %1458 = vmatprep.subr.bf16.mxu0 0
        %1459 = vmatpush2.bf16.xpose.msra.mxu0 0
        %1460 = vmatprep.subr.bf16.mxu0 0
        %1461 = vmatpush2.bf16.xpose.msra.mxu0 0
        %1462 = vmatprep.subr.bf16.mxu0 0
        %1463 = vmatpush2.bf16.xpose.msra.mxu0 0
        %1464 = vmatprep.subr.bf16.mxu0 0
        %1465 = vmatpush2.bf16.xpose.msra.mxu0 0
        %1466 = vmatprep.subr.bf16.mxu0 0
        %1467 = vmatpush2.bf16.xpose.msra.mxu0 0
        %1468 = vmatprep.mubr.bf16.mxu0 0
        %1469 = vmatmul.mubr.bf16.gmra.mxu0 %v1431
        %v1470 = vpop.f32.mrf.mxu0
        %v1471 = vadd.f32 0.0, %v1470
        %v1472 = vpop.f32.mrf.mxu0
        %v1473 = vpop.f32.mrf.mxu0
        %v1474 = vpop.f32.mrf.mxu0
        %1475 = vdwg.mxu0
        %v1476 = vsel %vm625, -1e+30, %v1471
        %v1477 = vsel %vm576, %v1476, -inf
        %1478 = vmax.xlane.f32.xlu0 %v1477
        %v1479 = vpop.xlane.xlu0 %1478
        %v1480 = vsub.f32 %v1476, %v1479
        %v1481 = vmul.f32 %v1480, 1.442695
        %v1482 = vpow.pop %v1481
        %v1483 = vsel %vm576, %v1482, 0.0
        %1484 = vadd.xlane.f32.xlu0 %v1483
        %v1485 = vpop.xlane.xlu0 %1484
        %v1486 = vrcp.pop %v1485
        %v1487 = vmul.f32 %v1485, %v1486
        %v1488 = vsub.f32 2.0, %v1487
        %v1489 = vmul.f32 %v1486, %v1488
        %v1490 = vmul.f32 %v1482, %v1489
        %v1491 = vpack.c.bf16 %v1490, %v1490
        %v1492 = vpack.c.bf16 %v1423, %v1423
        %v1494 = vsel %vm576, %v1491, 0
        %v1497 = vsel %vm646, %v1492, 0
        %1499 = vmatprep.subr.bf16.mxu0 0
        %1500 = vmatpush1.bf16.msra.mxu0 0
        %1501 = vmatprep.subr.bf16.mxu0 0
        %1502 = vmatpush1.bf16.msra.mxu0 0
        %1503 = vmatprep.subr.bf16.mxu0 0
        %1504 = vmatpush1.bf16.msra.mxu0 0
        %1505 = vmatprep.subr.bf16.mxu0 0
        %1506 = vmatpush1.bf16.msra.mxu0 0
        %1507 = vmatprep.subr.bf16.mxu0 0
        %1508 = vmatpush1.bf16.msra.mxu0 0
        %1509 = vmatprep.subr.bf16.mxu0 0
        %1510 = vmatpush1.bf16.msra.mxu0 0
        %1511 = vmatprep.subr.bf16.mxu0 0
        %1512 = vmatpush1.bf16.msra.mxu0 0
        %1513 = vmatprep.subr.bf16.mxu0 0
        %1514 = vmatpush1.bf16.msra.mxu0 %v1497
        %1515 = vmatprep.subr.bf16.mxu0 0
        %1516 = vmatpush2.bf16.msra.mxu0 0
        %1517 = vmatprep.subr.bf16.mxu0 0
        %1518 = vmatpush2.bf16.msra.mxu0 0
        %1519 = vmatprep.subr.bf16.mxu0 0
        %1520 = vmatpush2.bf16.msra.mxu0 0
        %1521 = vmatprep.subr.bf16.mxu0 0
        %1522 = vmatpush2.bf16.msra.mxu0 0
        %1523 = vmatprep.subr.bf16.mxu0 0
        %1524 = vmatpush2.bf16.msra.mxu0 0
        %1525 = vmatprep.subr.bf16.mxu0 0
        %1526 = vmatpush2.bf16.msra.mxu0 0
        %1527 = vmatprep.subr.bf16.mxu0 0
        %1528 = vmatpush2.bf16.msra.mxu0 0
        %1529 = vmatprep.subr.bf16.mxu0 0
        %1530 = vmatpush2.bf16.msra.mxu0 0
        %1531 = vmatprep.mubr.bf16.mxu0 0
        %1532 = vmatmul.mubr.bf16.gmra.mxu0 %v1494
        %v1533 = vpop.f32.mrf.mxu0
        %v1534 = vadd.f32 0.0, %v1533
        %v1535 = vpop.f32.mrf.mxu0
        %v1536 = vpop.f32.mrf.mxu0
        %v1537 = vpop.f32.mrf.mxu0
        %1538 = vdwg.mxu0
        %v1539 = vpack.c.bf16 %v1534, %v1534
        %1541 = vrot.lane.b32.xlu0 %v973, 8
        %v1542 = vpop.permute.xlu0 %1541
        %1544 = vrot.lane.b32.xlu0 %v1256, 16
        %v1545 = vpop.permute.xlu0 %1544
        %1547 = vrot.lane.b32.xlu0 %v1539, 24
        %v1548 = vpop.permute.xlu0 %1547
        %v1551 = vsel %vm576, %v690, %v1542
        %vm1552 = vcmask 130048
        %v1554 = vsel %vm1552, %v1551, %v1545
        %vm1555 = vcmask 195584
        %v1557 = vsel %vm1555, %v1554, %v1548
        %v1558 = vld [vmem:[%s7] sm:$0xf]
        %v1559 = vld [vmem:[%s7 + $0x4] sm:$0xf]
        %v1560 = vld [vmem:[%s7 + $0x8] sm:$0xf]
        %v1561 = vld [vmem:[%s7 + $0xc] sm:$0xf]
        %v1566 = vunpack.c.l.b16 %v1558
        %v1567 = vunpack.c.l.b16 %v1559
        %v1568 = vunpack.c.l.b16 %v1560
        %v1569 = vunpack.c.l.b16 %v1561
        %v1570 = vpack.c.b16 %v1567, %v1566
        %v1571 = vpack.c.b16 %v1569, %v1568
        %v1574 = vsel %vm412, %v1557, 0
        %1576 = vmatprep.subr.bf16.mxu0 0
        %1577 = vmatpush1.bf16.msra.mxu0 0
        %1578 = vmatprep.subr.bf16.mxu0 0
        %1579 = vmatpush1.bf16.msra.mxu0 0
        %1580 = vmatprep.subr.bf16.mxu0 0
        %1581 = vmatpush1.bf16.msra.mxu0 0
        %1582 = vmatprep.subr.bf16.mxu0 0
        %1583 = vmatpush1.bf16.msra.mxu0 0
        %1584 = vmatprep.subr.bf16.mxu0 0
        %1585 = vmatpush1.bf16.msra.mxu0 0
        %1586 = vmatprep.subr.bf16.mxu0 0
        %1587 = vmatpush1.bf16.msra.mxu0 0
        %1588 = vmatprep.subr.bf16.mxu0 0
        %1589 = vmatpush1.bf16.msra.mxu0 %v1571
        %1590 = vmatprep.subr.bf16.mxu0 0
        %1591 = vmatpush1.bf16.msra.mxu0 %v1570
        %1592 = vmatprep.subr.bf16.mxu0 0
        %1593 = vmatpush2.bf16.msra.mxu0 0
        %1594 = vmatprep.subr.bf16.mxu0 0
        %1595 = vmatpush2.bf16.msra.mxu0 0
        %1596 = vmatprep.subr.bf16.mxu0 0
        %1597 = vmatpush2.bf16.msra.mxu0 0
        %1598 = vmatprep.subr.bf16.mxu0 0
        %1599 = vmatpush2.bf16.msra.mxu0 0
        %1600 = vmatprep.subr.bf16.mxu0 0
        %1601 = vmatpush2.bf16.msra.mxu0 0
        %1602 = vmatprep.subr.bf16.mxu0 0
        %1603 = vmatpush2.bf16.msra.mxu0 0
        %1604 = vmatprep.subr.bf16.mxu0 0
        %1605 = vmatpush2.bf16.msra.mxu0 0
        %1606 = vmatprep.subr.bf16.mxu0 0
        %1607 = vmatpush2.bf16.msra.mxu0 0
        %1608 = vmatprep.mubr.bf16.mxu0 0
        %1609 = vmatmul.mubr.bf16.gmra.mxu0 %v1574
        %v1610 = vpop.f32.mrf.mxu0
        %v1611 = vadd.f32 0.0, %v1610
        %v1612 = vpop.f32.mrf.mxu0
        %v1613 = vpop.f32.mrf.mxu0
        %v1614 = vpop.f32.mrf.mxu0
        %1615 = vdwg.mxu0
        %1616 = vst.msk [vmem:[%s365] sm:$0xff] %vm412, %v1611
        %s1617 = sand.u32 %s236, 1
        %s1618 = scalar_lea.sflag [#allocation3], %s1617
        %s1619 = sand.u32 %s236, 1
        %s1620 = smul.addr %s1619, 8
        %s1621 = scalar_lea.vmem [#allocation2], %s1620
        // Predicated region
        $region53: #{tpu_custom_call.1} parent=51 // pred_check
          %p1622 = pneg %p246
        $region54: #{tpu_custom_call.1} parent=51 // pred_check_branch
          %1624 = sbr.rel (%p1622) target = $region56
        $region55: #{tpu_custom_call.1} parent=51 // pred_region
          %s1626 = ssub.s32 128, 128
          %1627 = vsyncadd %s1618, %s1626
          %s1628 = sadd.s32 %s27, %s26
          %s1629 = smul.addr %s1628, 128
          %s1630 = scalar_lea.hbm %s8, %s1629
          %s1632 = sshll.u32 %s1621, 4
          %s1633 = int_to_ptr.vmem [resolvable:$true] %s1632
          %1635 = dma.vmem_to_hbm [thread:$0]  %s1633, 128, %s1630, %s1618
        $region56: #{tpu_custom_call.1} parent=51 // pred_fallthru
          _
      $region52: #{tpu_custom_call.1} parent=5 // pred_fallthru
        _
      %p1636 = scmp.le.s32.totalorder 2, %s17
      // Predicated region
      $region57: #{tpu_custom_call.1} parent=5 // pred_check
        %p1637 = pneg %p1636
      $region58: #{tpu_custom_call.1} parent=5 // pred_check_branch
        %1639 = sbr.rel (%p1637) target = $region60
      $region59: #{tpu_custom_call.1} parent=5 // pred_region
        %s1640 = ssub.s32 %s17, 2
        // Predicated region
        $region61: #{tpu_custom_call.1} parent=59 // pred_check
          %p1641 = pneg %p252
        $region62: #{tpu_custom_call.1} parent=59 // pred_check_branch
          %1643 = sbr.rel (%p1641) target = $region64
        $region63: #{tpu_custom_call.1} parent=59 // pred_region
          %s1644 = sand.u32 %s237, 1
          %s1645 = scalar_lea.sflag [#allocation3], %s1644
          %s1646 = sand.u32 %s237, 1
          %s1647 = smul.addr %s1646, 8
          %s1648 = scalar_lea.vmem [#allocation2], %s1647
          %1649 = dma.done %s1645, 128
        $region64: #{tpu_custom_call.1} parent=59 // pred_fallthru
          _
      $region60: #{tpu_custom_call.1} parent=5 // pred_fallthru
        _
    $region6: #{tpu_custom_call.1} parent=1 // loop_footer
      %s21 = sadd.s32 1, %s17
    $region7: #{tpu_custom_call.1} parent=1 // loop_footer_branch
      %16 = sbr.rel target = $region3
    $region8: #{tpu_custom_call.1} parent=1 // loop_exit
      _
    %1650 = vsyncpa [#allocation3], 1
    %s1651 = scalar_lea.sflag [#allocation3], 1
    %1652 = vsyncpa %s1651, 1

</llo_original>
